<compile_context>
chip_gen: v5e
topology: v5e:2x2
jax: 0.10.0
libtpu: 0.0.40
codegen_flags: <defaults>
</compile_context>

<pallas_src>
import functools

import jax
import jax.numpy as jnp
from jax.experimental import pallas as pl
from jax.experimental.pallas import tpu as pltpu

_LANE = 128


def _lstm_recurrence_kernel(xp_ref, whh_ref, h_out_ref, h_sc, c_sc,
                            *, d_hp, t_chunk, unroll):
    """One grid step = T_CHUNK timesteps of the LSTM recurrence.

    xp_ref : (t_chunk, B, 4*d_hp)  precomputed x @ W_ih^T + b  (gate-padded)
    whh_ref: (d_hp, 4*d_hp)        gate-padded W_hh^T
    h_out  : (t_chunk, B, d_hp)    hidden states for this chunk (lane-dense)
    h_sc/c_sc : (B, d_hp)          state carried across grid steps (chunks)
    """
    @pl.when(pl.program_id(0) == 0)
    def _():
        h_sc[...] = jnp.zeros_like(h_sc)
        c_sc[...] = jnp.zeros_like(c_sc)

    def step(t, carry):
        h_prev, c_prev = carry
        # Only the recurrent matmul stays on the serial critical path.
        gates = xp_ref[t] + jnp.dot(h_prev, whh_ref[...],
                                    preferred_element_type=jnp.float32)
        # Gate slices are at 128-lane-aligned boundaries (d_hp % 128 == 0).
        i_g = jax.nn.sigmoid(gates[:, 0 * d_hp:1 * d_hp])
        f_g = jax.nn.sigmoid(gates[:, 1 * d_hp:2 * d_hp])
        g_g = jnp.tanh(gates[:, 2 * d_hp:3 * d_hp])
        o_g = jax.nn.sigmoid(gates[:, 3 * d_hp:4 * d_hp])
        c_new = f_g * c_prev + i_g * g_g
        h_new = o_g * jnp.tanh(c_new)
        h_out_ref[t] = h_new.astype(h_out_ref.dtype)
        return (h_new, c_new)

    h_fin, c_fin = jax.lax.fori_loop(0, t_chunk, step,
                                     (h_sc[...], c_sc[...]), unroll=unroll)
    h_sc[...] = h_fin
    c_sc[...] = c_fin


def _pad_gates_T(w, d_h, d_hp):
    """(4*D_h, K) PyTorch-layout gate-stacked weight -> (K, 4*D_hp) transposed,
    with each gate occupying its own 128-aligned column block (zero padded)."""
    k_dim = w.shape[1]
    w4 = w.reshape(4, d_h, k_dim)
    w4p = jnp.zeros((4, d_hp, k_dim), w.dtype).at[:, :d_h, :].set(w4)
    return jnp.transpose(w4p, (2, 0, 1)).reshape(k_dim, 4 * d_hp)


def lstm_sentiment_forward(x, params, *, t_chunk=None):
    """x: (B, T, D_i) float32 -> (B, T, 3) float32."""
    B, T, D_i = x.shape
    w_ih, w_hh = params["w_ih"], params["w_hh"]          # (4*D_h, D_i), (4*D_h, D_h)
    b = params["b_ih"] + params["b_hh"]                  # (4*D_h,)
    w_lin, b_lin = params["w_lin"], params["b_lin"]      # (3, D_h), (3,)
    D_h = w_hh.shape[1]
    D_hp = ((D_h + _LANE - 1) // _LANE) * _LANE          # per-gate 128-lane padding

    # --- gate-padded, transposed parameter layouts (built once, outside kernel) ---
    wih_p_t = _pad_gates_T(w_ih, D_h, D_hp)              # (D_i, 4*D_hp)
    whh_p_t = jnp.zeros((D_hp, 4 * D_hp), jnp.float32).at[:D_h, :].set(
        _pad_gates_T(w_hh, D_h, D_hp))                   # (D_hp, 4*D_hp)
    b_p = jnp.zeros((4, D_hp), jnp.float32).at[:, :D_h].set(
        b.reshape(4, D_h)).reshape(4 * D_hp)             # (4*D_hp,)
    wlin_p_t = jnp.zeros((D_hp, 3), jnp.float32).at[:D_h, :].set(w_lin.T)  # (D_hp, 3)

    # --- 1) hoisted input projection + bias: one big MXU matmul, time-major ---
    x_proj = jnp.einsum("btd,dg->tbg", x, wih_p_t) + b_p          # (T, B, 4*D_hp)

    # --- 2) time chunking: amortize per-grid-step overhead, keep chunk in VMEM ---
    if t_chunk is None:
        budget = 8 * 1024 * 1024                                   # conservative (v7x-safe)
        per_step = B * 5 * D_hp * 4 * 2                            # x_proj + h_out, double-buffered
        t_chunk = int(max(1, min(T, 256, budget // max(per_step, 1))))
    n_chunks = -(-T // t_chunk)
    T_pad = n_chunks * t_chunk
    if T_pad != T:
        x_proj = jnp.pad(x_proj, ((0, T_pad - T), (0, 0), (0, 0)))
    unroll = True if t_chunk <= 32 else 8

    kernel = functools.partial(_lstm_recurrence_kernel,
                               d_hp=D_hp, t_chunk=t_chunk, unroll=unroll)

    h_all = pl.pallas_call(
        kernel,
        out_shape=jax.ShapeDtypeStruct((T_pad, B, D_hp), jnp.float32),
        grid_spec=pltpu.PrefetchScalarGridSpec(
            num_scalar_prefetch=0,
            grid=(n_chunks,),
            in_specs=[
                pl.BlockSpec((t_chunk, B, 4 * D_hp), lambda c: (c, 0, 0)),  # x_proj chunk
                pl.BlockSpec((D_hp, 4 * D_hp), lambda c: (0, 0)),           # W_hh^T (resident)
            ],
            out_specs=pl.BlockSpec((t_chunk, B, D_hp), lambda c: (c, 0, 0)),
            scratch_shapes=[
                pltpu.VMEM((B, D_hp), jnp.float32),   # h state (persists across chunks)
                pltpu.VMEM((B, D_hp), jnp.float32),   # c state
            ],
        ),
        compiler_params=pltpu.CompilerParams(
            dimension_semantics=("arbitrary",),       # time recurrence is sequential
        ),
    )(x_proj, whh_p_t)

    # --- 3) classifier outside the recurrence: one matmul, transposes folded in ---
    y = jnp.einsum("tbh,hc->btc", h_all[:T], wlin_p_t) + b_lin     # (B, T, 3)
    return y


def make_params(key, D_i, D_h):
    """Deterministic synthetic parameters with PyTorch nn.LSTM / nn.Linear layouts."""
    k = jax.random.split(key, 6)
    scale = 1.0 / jnp.sqrt(jnp.float32(D_h))
    return {
        "w_ih": jax.random.uniform(k[0], (4 * D_h, D_i), jnp.float32, -scale, scale),
        "w_hh": jax.random.uniform(k[1], (4 * D_h, D_h), jnp.float32, -scale, scale),
        "b_ih": jax.random.uniform(k[2], (4 * D_h,), jnp.float32, -scale, scale),
        "b_hh": jax.random.uniform(k[3], (4 * D_h,), jnp.float32, -scale, scale),
        "w_lin": jax.random.uniform(k[4], (3, D_h), jnp.float32, -scale, scale),
        "b_lin": jax.random.uniform(k[5], (3,), jnp.float32, -scale, scale),
    }


def reference_forward(x, p):
    """Pure-JAX reference (lax.scan) replicating PyTorch LSTM + Linear semantics."""
    B, T, D_i = x.shape
    D_h = p["w_hh"].shape[1]
    wih_t, whh_t = p["w_ih"].T, p["w_hh"].T
    b = (p["b_ih"] + p["b_hh"])[None, :]

    def step(carry, x_t):
        h, c = carry
        gates = x_t @ wih_t + h @ whh_t + b
        i = jax.nn.sigmoid(gates[:, 0 * D_h:1 * D_h])
        f = jax.nn.sigmoid(gates[:, 1 * D_h:2 * D_h])
        g = jnp.tanh(gates[:, 2 * D_h:3 * D_h])
        o = jax.nn.sigmoid(gates[:, 3 * D_h:4 * D_h])
        c = f * c + i * g
        h = o * jnp.tanh(c)
        return (h, c), h

    h0 = jnp.zeros((B, D_h), jnp.float32)
    c0 = jnp.zeros((B, D_h), jnp.float32)
    _, hs = jax.lax.scan(step, (h0, c0), jnp.transpose(x, (1, 0, 2)))
    out = jnp.transpose(hs, (1, 0, 2))                   # (B, T, D_h)
    return out @ p["w_lin"].T + p["b_lin"]               # (B, T, 3)


if __name__ == "__main__":
    B, T, D_i, D_h = 2, 8, 16, 32
    key = jax.random.PRNGKey(0)
    kx, kp = jax.random.split(key)
    x = jax.random.normal(kx, (B, T, D_i), jnp.float32)
    params = make_params(kp, D_i, D_h)

    y = jax.jit(lstm_sentiment_forward)(x, params)
    jax.block_until_ready(y)

    y_ref = reference_forward(x, params)
    assert y.shape == (B, T, 3)
    assert jnp.allclose(y, y_ref, atol=1e-4, rtol=1e-4), "mismatch vs reference"

    print("KERNEL_OK")
</pallas_src>

<mosaic_0001>
module attributes {stable_mosaic.version = 11 : i64} {
  func.func @_lstm_recurrence_kernel(%arg0: i32, %arg1: memref<8x2x512xf32, #tpu.memory_space<vmem>>, %arg2: memref<128x512xf32, #tpu.memory_space<vmem>>, %arg3: memref<8x2x128xf32, #tpu.memory_space<vmem>>, %arg4: memref<2x128xf32, #tpu.memory_space<vmem>>, %arg5: memref<2x128xf32, #tpu.memory_space<vmem>>) attributes {dimension_semantics = [#tpu.dimension_semantics<arbitrary>], iteration_bounds = array<i64: 1>, scalar_prefetch = 0 : i64, scratch_operands = 2 : i64, tpu.core_type = #tpu.core_type<tc>, window_params = [{transform_indices = @transform_0, window_bounds = array<i64: 8, 2, 512>}, {pipeline_mode = #tpu.pipeline_mode<synchronous>, transform_indices = @transform_1, window_bounds = array<i64: 128, 512>}, {transform_indices = @transform_2, window_bounds = array<i64: 8, 2, 128>}]} {
    %c0_i32 = arith.constant 0 : i32
    %0 = arith.cmpi eq, %arg0, %c0_i32 : i32
    %1 = arith.extui %0 : i1 to i32
    %c0_i32_0 = arith.constant 0 : i32
    %2 = arith.cmpi ne, %1, %c0_i32_0 : i32
    scf.if %2 {
      %cst_88 = arith.constant 0.000000e+00 : f32
      %287 = vector.broadcast %cst_88 : f32 to vector<2x128xf32>
      %c0_89 = arith.constant 0 : index
      %c0_90 = arith.constant 0 : index
      %288 = vector.load %arg4[%c0_89, %c0_90] : memref<2x128xf32, #tpu.memory_space<vmem>>, vector<2x128xf32>
      tpu.vector_store %arg4[%c0_89, %c0_90], %287 {strides = array<i32>} : memref<2x128xf32, #tpu.memory_space<vmem>>, vector<2x128xf32>,
      %cst_91 = arith.constant 0.000000e+00 : f32
      %289 = vector.broadcast %cst_91 : f32 to vector<2x128xf32>
      %c0_92 = arith.constant 0 : index
      %c0_93 = arith.constant 0 : index
      %290 = vector.load %arg5[%c0_92, %c0_93] : memref<2x128xf32, #tpu.memory_space<vmem>>, vector<2x128xf32>
      tpu.vector_store %arg5[%c0_92, %c0_93], %289 {strides = array<i32>} : memref<2x128xf32, #tpu.memory_space<vmem>>, vector<2x128xf32>,
    } else {
    }
    %c0 = arith.constant 0 : index
    %c0_1 = arith.constant 0 : index
    %3 = vector.load %arg4[%c0, %c0_1] : memref<2x128xf32, #tpu.memory_space<vmem>>, vector<2x128xf32>
    %c0_2 = arith.constant 0 : index
    %c0_3 = arith.constant 0 : index
    %4 = vector.load %arg5[%c0_2, %c0_3] : memref<2x128xf32, #tpu.memory_space<vmem>>, vector<2x128xf32>
    %c0_i32_4 = arith.constant 0 : i32
    %5 = arith.index_cast %c0_i32_4 : i32 to index
    %c0_5 = arith.constant 0 : index
    %c0_6 = arith.constant 0 : index
    %6 = vector.load %arg1[%5, %c0_5, %c0_6] : memref<8x2x512xf32, #tpu.memory_space<vmem>>, vector<1x2x512xf32>
    %7 = vector.shape_cast %6 : vector<1x2x512xf32> to vector<2x512xf32>
    %c0_7 = arith.constant 0 : index
    %c0_8 = arith.constant 0 : index
    %8 = vector.load %arg2[%c0_7, %c0_8] : memref<128x512xf32, #tpu.memory_space<vmem>>, vector<128x512xf32>
    %cst = arith.constant dense<0.000000e+00> : vector<2x512xf32>
    %9 = tpu.matmul %3, %8, %cst {dimension_numbers = #tpu.dot_dimension_numbers<[1], [0], [0], [1], [0, 0, 1, 1], [], []>} : vector<2x128xf32>, vector<128x512xf32>, vector<2x512xf32> -> vector<2x512xf32>
    %10 = arith.addf %7, %9 : vector<2x512xf32>
    %11 = vector.extract_strided_slice %10 {offsets = [0, 0], sizes = [2, 128], strides = [1, 1]} : vector<2x512xf32> to vector<2x128xf32>
    %12 = arith.negf %11 : vector<2x128xf32>
    %13 = math.exp %12 : vector<2x128xf32>
    %cst_9 = arith.constant 1.000000e+00 : f32
    %14 = vector.broadcast %cst_9 : f32 to vector<2x128xf32>
    %15 = arith.addf %14, %13 : vector<2x128xf32>
    %16 = arith.divf %14, %15 : vector<2x128xf32>
    %17 = vector.extract_strided_slice %10 {offsets = [0, 128], sizes = [2, 128], strides = [1, 1]} : vector<2x512xf32> to vector<2x128xf32>
    %18 = arith.negf %17 : vector<2x128xf32>
    %19 = math.exp %18 : vector<2x128xf32>
    %cst_10 = arith.constant 1.000000e+00 : f32
    %20 = vector.broadcast %cst_10 : f32 to vector<2x128xf32>
    %21 = arith.addf %20, %19 : vector<2x128xf32>
    %22 = arith.divf %20, %21 : vector<2x128xf32>
    %23 = vector.extract_strided_slice %10 {offsets = [0, 256], sizes = [2, 128], strides = [1, 1]} : vector<2x512xf32> to vector<2x128xf32>
    %24 = math.tanh %23 : vector<2x128xf32>
    %25 = vector.extract_strided_slice %10 {offsets = [0, 384], sizes = [2, 128], strides = [1, 1]} : vector<2x512xf32> to vector<2x128xf32>
    %26 = arith.negf %25 : vector<2x128xf32>
    %27 = math.exp %26 : vector<2x128xf32>
    %cst_11 = arith.constant 1.000000e+00 : f32
    %28 = vector.broadcast %cst_11 : f32 to vector<2x128xf32>
    %29 = arith.addf %28, %27 : vector<2x128xf32>
    %30 = arith.divf %28, %29 : vector<2x128xf32>
    %31 = arith.mulf %22, %4 : vector<2x128xf32>
    %32 = arith.mulf %16, %24 : vector<2x128xf32>
    %33 = arith.addf %31, %32 : vector<2x128xf32>
    %34 = math.tanh %33 : vector<2x128xf32>
    %35 = arith.mulf %30, %34 : vector<2x128xf32>
    %36 = arith.index_cast %c0_i32_4 : i32 to index
    %c0_12 = arith.constant 0 : index
    %c0_13 = arith.constant 0 : index
    %37 = vector.load %arg3[%36, %c0_12, %c0_13] : memref<8x2x128xf32, #tpu.memory_space<vmem>>, vector<1x2x128xf32>
    %38 = vector.shape_cast %37 : vector<1x2x128xf32> to vector<2x128xf32>
    %39 = vector.shape_cast %35 : vector<2x128xf32> to vector<1x2x128xf32>
    tpu.vector_store %arg3[%36, %c0_12, %c0_13], %39 {strides = array<i32>} : memref<8x2x128xf32, #tpu.memory_space<vmem>>, vector<1x2x128xf32>,
    %c1_i32 = arith.constant 1 : i32
    %40 = arith.index_cast %c1_i32 : i32 to index
    %c0_14 = arith.constant 0 : index
    %c0_15 = arith.constant 0 : index
    %41 = vector.load %arg1[%40, %c0_14, %c0_15] : memref<8x2x512xf32, #tpu.memory_space<vmem>>, vector<1x2x512xf32>
    %42 = vector.shape_cast %41 : vector<1x2x512xf32> to vector<2x512xf32>
    %c0_16 = arith.constant 0 : index
    %c0_17 = arith.constant 0 : index
    %43 = vector.load %arg2[%c0_16, %c0_17] : memref<128x512xf32, #tpu.memory_space<vmem>>, vector<128x512xf32>
    %cst_18 = arith.constant dense<0.000000e+00> : vector<2x512xf32>
    %44 = tpu.matmul %35, %43, %cst_18 {dimension_numbers = #tpu.dot_dimension_numbers<[1], [0], [0], [1], [0, 0, 1, 1], [], []>} : vector<2x128xf32>, vector<128x512xf32>, vector<2x512xf32> -> vector<2x512xf32>
    %45 = arith.addf %42, %44 : vector<2x512xf32>
    %46 = vector.extract_strided_slice %45 {offsets = [0, 0], sizes = [2, 128], strides = [1, 1]} : vector<2x512xf32> to vector<2x128xf32>
    %47 = arith.negf %46 : vector<2x128xf32>
    %48 = math.exp %47 : vector<2x128xf32>
    %cst_19 = arith.constant 1.000000e+00 : f32
    %49 = vector.broadcast %cst_19 : f32 to vector<2x128xf32>
    %50 = arith.addf %49, %48 : vector<2x128xf32>
    %51 = arith.divf %49, %50 : vector<2x128xf32>
    %52 = vector.extract_strided_slice %45 {offsets = [0, 128], sizes = [2, 128], strides = [1, 1]} : vector<2x512xf32> to vector<2x128xf32>
    %53 = arith.negf %52 : vector<2x128xf32>
    %54 = math.exp %53 : vector<2x128xf32>
    %cst_20 = arith.constant 1.000000e+00 : f32
    %55 = vector.broadcast %cst_20 : f32 to vector<2x128xf32>
    %56 = arith.addf %55, %54 : vector<2x128xf32>
    %57 = arith.divf %55, %56 : vector<2x128xf32>
    %58 = vector.extract_strided_slice %45 {offsets = [0, 256], sizes = [2, 128], strides = [1, 1]} : vector<2x512xf32> to vector<2x128xf32>
    %59 = math.tanh %58 : vector<2x128xf32>
    %60 = vector.extract_strided_slice %45 {offsets = [0, 384], sizes = [2, 128], strides = [1, 1]} : vector<2x512xf32> to vector<2x128xf32>
    %61 = arith.negf %60 : vector<2x128xf32>
    %62 = math.exp %61 : vector<2x128xf32>
    %cst_21 = arith.constant 1.000000e+00 : f32
    %63 = vector.broadcast %cst_21 : f32 to vector<2x128xf32>
    %64 = arith.addf %63, %62 : vector<2x128xf32>
    %65 = arith.divf %63, %64 : vector<2x128xf32>
    %66 = arith.mulf %57, %33 : vector<2x128xf32>
    %67 = arith.mulf %51, %59 : vector<2x128xf32>
    %68 = arith.addf %66, %67 : vector<2x128xf32>
    %69 = math.tanh %68 : vector<2x128xf32>
    %70 = arith.mulf %65, %69 : vector<2x128xf32>
    %71 = arith.index_cast %c1_i32 : i32 to index
    %c0_22 = arith.constant 0 : index
    %c0_23 = arith.constant 0 : index
    %72 = vector.load %arg3[%71, %c0_22, %c0_23] : memref<8x2x128xf32, #tpu.memory_space<vmem>>, vector<1x2x128xf32>
    %73 = vector.shape_cast %72 : vector<1x2x128xf32> to vector<2x128xf32>
    %74 = vector.shape_cast %70 : vector<2x128xf32> to vector<1x2x128xf32>
    tpu.vector_store %arg3[%71, %c0_22, %c0_23], %74 {strides = array<i32>} : memref<8x2x128xf32, #tpu.memory_space<vmem>>, vector<1x2x128xf32>,
    %c2_i32 = arith.constant 2 : i32
    %75 = arith.index_cast %c2_i32 : i32 to index
    %c0_24 = arith.constant 0 : index
    %c0_25 = arith.constant 0 : index
    %76 = vector.load %arg1[%75, %c0_24, %c0_25] : memref<8x2x512xf32, #tpu.memory_space<vmem>>, vector<1x2x512xf32>
    %77 = vector.shape_cast %76 : vector<1x2x512xf32> to vector<2x512xf32>
    %c0_26 = arith.constant 0 : index
    %c0_27 = arith.constant 0 : index
    %78 = vector.load %arg2[%c0_26, %c0_27] : memref<128x512xf32, #tpu.memory_space<vmem>>, vector<128x512xf32>
    %cst_28 = arith.constant dense<0.000000e+00> : vector<2x512xf32>
    %79 = tpu.matmul %70, %78, %cst_28 {dimension_numbers = #tpu.dot_dimension_numbers<[1], [0], [0], [1], [0, 0, 1, 1], [], []>} : vector<2x128xf32>, vector<128x512xf32>, vector<2x512xf32> -> vector<2x512xf32>
    %80 = arith.addf %77, %79 : vector<2x512xf32>
    %81 = vector.extract_strided_slice %80 {offsets = [0, 0], sizes = [2, 128], strides = [1, 1]} : vector<2x512xf32> to vector<2x128xf32>
    %82 = arith.negf %81 : vector<2x128xf32>
    %83 = math.exp %82 : vector<2x128xf32>
    %cst_29 = arith.constant 1.000000e+00 : f32
    %84 = vector.broadcast %cst_29 : f32 to vector<2x128xf32>
    %85 = arith.addf %84, %83 : vector<2x128xf32>
    %86 = arith.divf %84, %85 : vector<2x128xf32>
    %87 = vector.extract_strided_slice %80 {offsets = [0, 128], sizes = [2, 128], strides = [1, 1]} : vector<2x512xf32> to vector<2x128xf32>
    %88 = arith.negf %87 : vector<2x128xf32>
    %89 = math.exp %88 : vector<2x128xf32>
    %cst_30 = arith.constant 1.000000e+00 : f32
    %90 = vector.broadcast %cst_30 : f32 to vector<2x128xf32>
    %91 = arith.addf %90, %89 : vector<2x128xf32>
    %92 = arith.divf %90, %91 : vector<2x128xf32>
    %93 = vector.extract_strided_slice %80 {offsets = [0, 256], sizes = [2, 128], strides = [1, 1]} : vector<2x512xf32> to vector<2x128xf32>
    %94 = math.tanh %93 : vector<2x128xf32>
    %95 = vector.extract_strided_slice %80 {offsets = [0, 384], sizes = [2, 128], strides = [1, 1]} : vector<2x512xf32> to vector<2x128xf32>
    %96 = arith.negf %95 : vector<2x128xf32>
    %97 = math.exp %96 : vector<2x128xf32>
    %cst_31 = arith.constant 1.000000e+00 : f32
    %98 = vector.broadcast %cst_31 : f32 to vector<2x128xf32>
    %99 = arith.addf %98, %97 : vector<2x128xf32>
    %100 = arith.divf %98, %99 : vector<2x128xf32>
    %101 = arith.mulf %92, %68 : vector<2x128xf32>
    %102 = arith.mulf %86, %94 : vector<2x128xf32>
    %103 = arith.addf %101, %102 : vector<2x128xf32>
    %104 = math.tanh %103 : vector<2x128xf32>
    %105 = arith.mulf %100, %104 : vector<2x128xf32>
    %106 = arith.index_cast %c2_i32 : i32 to index
    %c0_32 = arith.constant 0 : index
    %c0_33 = arith.constant 0 : index
    %107 = vector.load %arg3[%106, %c0_32, %c0_33] : memref<8x2x128xf32, #tpu.memory_space<vmem>>, vector<1x2x128xf32>
    %108 = vector.shape_cast %107 : vector<1x2x128xf32> to vector<2x128xf32>
    %109 = vector.shape_cast %105 : vector<2x128xf32> to vector<1x2x128xf32>
    tpu.vector_store %arg3[%106, %c0_32, %c0_33], %109 {strides = array<i32>} : memref<8x2x128xf32, #tpu.memory_space<vmem>>, vector<1x2x128xf32>,
    %c3_i32 = arith.constant 3 : i32
    %110 = arith.index_cast %c3_i32 : i32 to index
    %c0_34 = arith.constant 0 : index
    %c0_35 = arith.constant 0 : index
    %111 = vector.load %arg1[%110, %c0_34, %c0_35] : memref<8x2x512xf32, #tpu.memory_space<vmem>>, vector<1x2x512xf32>
    %112 = vector.shape_cast %111 : vector<1x2x512xf32> to vector<2x512xf32>
    %c0_36 = arith.constant 0 : index
    %c0_37 = arith.constant 0 : index
    %113 = vector.load %arg2[%c0_36, %c0_37] : memref<128x512xf32, #tpu.memory_space<vmem>>, vector<128x512xf32>
    %cst_38 = arith.constant dense<0.000000e+00> : vector<2x512xf32>
    %114 = tpu.matmul %105, %113, %cst_38 {dimension_numbers = #tpu.dot_dimension_numbers<[1], [0], [0], [1], [0, 0, 1, 1], [], []>} : vector<2x128xf32>, vector<128x512xf32>, vector<2x512xf32> -> vector<2x512xf32>
    %115 = arith.addf %112, %114 : vector<2x512xf32>
    %116 = vector.extract_strided_slice %115 {offsets = [0, 0], sizes = [2, 128], strides = [1, 1]} : vector<2x512xf32> to vector<2x128xf32>
    %117 = arith.negf %116 : vector<2x128xf32>
    %118 = math.exp %117 : vector<2x128xf32>
    %cst_39 = arith.constant 1.000000e+00 : f32
    %119 = vector.broadcast %cst_39 : f32 to vector<2x128xf32>
    %120 = arith.addf %119, %118 : vector<2x128xf32>
    %121 = arith.divf %119, %120 : vector<2x128xf32>
    %122 = vector.extract_strided_slice %115 {offsets = [0, 128], sizes = [2, 128], strides = [1, 1]} : vector<2x512xf32> to vector<2x128xf32>
    %123 = arith.negf %122 : vector<2x128xf32>
    %124 = math.exp %123 : vector<2x128xf32>
    %cst_40 = arith.constant 1.000000e+00 : f32
    %125 = vector.broadcast %cst_40 : f32 to vector<2x128xf32>
    %126 = arith.addf %125, %124 : vector<2x128xf32>
    %127 = arith.divf %125, %126 : vector<2x128xf32>
    %128 = vector.extract_strided_slice %115 {offsets = [0, 256], sizes = [2, 128], strides = [1, 1]} : vector<2x512xf32> to vector<2x128xf32>
    %129 = math.tanh %128 : vector<2x128xf32>
    %130 = vector.extract_strided_slice %115 {offsets = [0, 384], sizes = [2, 128], strides = [1, 1]} : vector<2x512xf32> to vector<2x128xf32>
    %131 = arith.negf %130 : vector<2x128xf32>
    %132 = math.exp %131 : vector<2x128xf32>
    %cst_41 = arith.constant 1.000000e+00 : f32
    %133 = vector.broadcast %cst_41 : f32 to vector<2x128xf32>
    %134 = arith.addf %133, %132 : vector<2x128xf32>
    %135 = arith.divf %133, %134 : vector<2x128xf32>
    %136 = arith.mulf %127, %103 : vector<2x128xf32>
    %137 = arith.mulf %121, %129 : vector<2x128xf32>
    %138 = arith.addf %136, %137 : vector<2x128xf32>
    %139 = math.tanh %138 : vector<2x128xf32>
    %140 = arith.mulf %135, %139 : vector<2x128xf32>
    %141 = arith.index_cast %c3_i32 : i32 to index
    %c0_42 = arith.constant 0 : index
    %c0_43 = arith.constant 0 : index
    %142 = vector.load %arg3[%141, %c0_42, %c0_43] : memref<8x2x128xf32, #tpu.memory_space<vmem>>, vector<1x2x128xf32>
    %143 = vector.shape_cast %142 : vector<1x2x128xf32> to vector<2x128xf32>
    %144 = vector.shape_cast %140 : vector<2x128xf32> to vector<1x2x128xf32>
    tpu.vector_store %arg3[%141, %c0_42, %c0_43], %144 {strides = array<i32>} : memref<8x2x128xf32, #tpu.memory_space<vmem>>, vector<1x2x128xf32>,
    %c4_i32 = arith.constant 4 : i32
    %145 = arith.index_cast %c4_i32 : i32 to index
    %c0_44 = arith.constant 0 : index
    %c0_45 = arith.constant 0 : index
    %146 = vector.load %arg1[%145, %c0_44, %c0_45] : memref<8x2x512xf32, #tpu.memory_space<vmem>>, vector<1x2x512xf32>
    %147 = vector.shape_cast %146 : vector<1x2x512xf32> to vector<2x512xf32>
    %c0_46 = arith.constant 0 : index
    %c0_47 = arith.constant 0 : index
    %148 = vector.load %arg2[%c0_46, %c0_47] : memref<128x512xf32, #tpu.memory_space<vmem>>, vector<128x512xf32>
    %cst_48 = arith.constant dense<0.000000e+00> : vector<2x512xf32>
    %149 = tpu.matmul %140, %148, %cst_48 {dimension_numbers = #tpu.dot_dimension_numbers<[1], [0], [0], [1], [0, 0, 1, 1], [], []>} : vector<2x128xf32>, vector<128x512xf32>, vector<2x512xf32> -> vector<2x512xf32>
    %150 = arith.addf %147, %149 : vector<2x512xf32>
    %151 = vector.extract_strided_slice %150 {offsets = [0, 0], sizes = [2, 128], strides = [1, 1]} : vector<2x512xf32> to vector<2x128xf32>
    %152 = arith.negf %151 : vector<2x128xf32>
    %153 = math.exp %152 : vector<2x128xf32>
    %cst_49 = arith.constant 1.000000e+00 : f32
    %154 = vector.broadcast %cst_49 : f32 to vector<2x128xf32>
    %155 = arith.addf %154, %153 : vector<2x128xf32>
    %156 = arith.divf %154, %155 : vector<2x128xf32>
    %157 = vector.extract_strided_slice %150 {offsets = [0, 128], sizes = [2, 128], strides = [1, 1]} : vector<2x512xf32> to vector<2x128xf32>
    %158 = arith.negf %157 : vector<2x128xf32>
    %159 = math.exp %158 : vector<2x128xf32>
    %cst_50 = arith.constant 1.000000e+00 : f32
    %160 = vector.broadcast %cst_50 : f32 to vector<2x128xf32>
    %161 = arith.addf %160, %159 : vector<2x128xf32>
    %162 = arith.divf %160, %161 : vector<2x128xf32>
    %163 = vector.extract_strided_slice %150 {offsets = [0, 256], sizes = [2, 128], strides = [1, 1]} : vector<2x512xf32> to vector<2x128xf32>
    %164 = math.tanh %163 : vector<2x128xf32>
    %165 = vector.extract_strided_slice %150 {offsets = [0, 384], sizes = [2, 128], strides = [1, 1]} : vector<2x512xf32> to vector<2x128xf32>
    %166 = arith.negf %165 : vector<2x128xf32>
    %167 = math.exp %166 : vector<2x128xf32>
    %cst_51 = arith.constant 1.000000e+00 : f32
    %168 = vector.broadcast %cst_51 : f32 to vector<2x128xf32>
    %169 = arith.addf %168, %167 : vector<2x128xf32>
    %170 = arith.divf %168, %169 : vector<2x128xf32>
    %171 = arith.mulf %162, %138 : vector<2x128xf32>
    %172 = arith.mulf %156, %164 : vector<2x128xf32>
    %173 = arith.addf %171, %172 : vector<2x128xf32>
    %174 = math.tanh %173 : vector<2x128xf32>
    %175 = arith.mulf %170, %174 : vector<2x128xf32>
    %176 = arith.index_cast %c4_i32 : i32 to index
    %c0_52 = arith.constant 0 : index
    %c0_53 = arith.constant 0 : index
    %177 = vector.load %arg3[%176, %c0_52, %c0_53] : memref<8x2x128xf32, #tpu.memory_space<vmem>>, vector<1x2x128xf32>
    %178 = vector.shape_cast %177 : vector<1x2x128xf32> to vector<2x128xf32>
    %179 = vector.shape_cast %175 : vector<2x128xf32> to vector<1x2x128xf32>
    tpu.vector_store %arg3[%176, %c0_52, %c0_53], %179 {strides = array<i32>} : memref<8x2x128xf32, #tpu.memory_space<vmem>>, vector<1x2x128xf32>,
    %c5_i32 = arith.constant 5 : i32
    %180 = arith.index_cast %c5_i32 : i32 to index
    %c0_54 = arith.constant 0 : index
    %c0_55 = arith.constant 0 : index
    %181 = vector.load %arg1[%180, %c0_54, %c0_55] : memref<8x2x512xf32, #tpu.memory_space<vmem>>, vector<1x2x512xf32>
    %182 = vector.shape_cast %181 : vector<1x2x512xf32> to vector<2x512xf32>
    %c0_56 = arith.constant 0 : index
    %c0_57 = arith.constant 0 : index
    %183 = vector.load %arg2[%c0_56, %c0_57] : memref<128x512xf32, #tpu.memory_space<vmem>>, vector<128x512xf32>
    %cst_58 = arith.constant dense<0.000000e+00> : vector<2x512xf32>
    %184 = tpu.matmul %175, %183, %cst_58 {dimension_numbers = #tpu.dot_dimension_numbers<[1], [0], [0], [1], [0, 0, 1, 1], [], []>} : vector<2x128xf32>, vector<128x512xf32>, vector<2x512xf32> -> vector<2x512xf32>
    %185 = arith.addf %182, %184 : vector<2x512xf32>
    %186 = vector.extract_strided_slice %185 {offsets = [0, 0], sizes = [2, 128], strides = [1, 1]} : vector<2x512xf32> to vector<2x128xf32>
    %187 = arith.negf %186 : vector<2x128xf32>
    %188 = math.exp %187 : vector<2x128xf32>
    %cst_59 = arith.constant 1.000000e+00 : f32
    %189 = vector.broadcast %cst_59 : f32 to vector<2x128xf32>
    %190 = arith.addf %189, %188 : vector<2x128xf32>
    %191 = arith.divf %189, %190 : vector<2x128xf32>
    %192 = vector.extract_strided_slice %185 {offsets = [0, 128], sizes = [2, 128], strides = [1, 1]} : vector<2x512xf32> to vector<2x128xf32>
    %193 = arith.negf %192 : vector<2x128xf32>
    %194 = math.exp %193 : vector<2x128xf32>
    %cst_60 = arith.constant 1.000000e+00 : f32
    %195 = vector.broadcast %cst_60 : f32 to vector<2x128xf32>
    %196 = arith.addf %195, %194 : vector<2x128xf32>
    %197 = arith.divf %195, %196 : vector<2x128xf32>
    %198 = vector.extract_strided_slice %185 {offsets = [0, 256], sizes = [2, 128], strides = [1, 1]} : vector<2x512xf32> to vector<2x128xf32>
    %199 = math.tanh %198 : vector<2x128xf32>
    %200 = vector.extract_strided_slice %185 {offsets = [0, 384], sizes = [2, 128], strides = [1, 1]} : vector<2x512xf32> to vector<2x128xf32>
    %201 = arith.negf %200 : vector<2x128xf32>
    %202 = math.exp %201 : vector<2x128xf32>
    %cst_61 = arith.constant 1.000000e+00 : f32
    %203 = vector.broadcast %cst_61 : f32 to vector<2x128xf32>
    %204 = arith.addf %203, %202 : vector<2x128xf32>
    %205 = arith.divf %203, %204 : vector<2x128xf32>
    %206 = arith.mulf %197, %173 : vector<2x128xf32>
    %207 = arith.mulf %191, %199 : vector<2x128xf32>
    %208 = arith.addf %206, %207 : vector<2x128xf32>
    %209 = math.tanh %208 : vector<2x128xf32>
    %210 = arith.mulf %205, %209 : vector<2x128xf32>
    %211 = arith.index_cast %c5_i32 : i32 to index
    %c0_62 = arith.constant 0 : index
    %c0_63 = arith.constant 0 : index
    %212 = vector.load %arg3[%211, %c0_62, %c0_63] : memref<8x2x128xf32, #tpu.memory_space<vmem>>, vector<1x2x128xf32>
    %213 = vector.shape_cast %212 : vector<1x2x128xf32> to vector<2x128xf32>
    %214 = vector.shape_cast %210 : vector<2x128xf32> to vector<1x2x128xf32>
    tpu.vector_store %arg3[%211, %c0_62, %c0_63], %214 {strides = array<i32>} : memref<8x2x128xf32, #tpu.memory_space<vmem>>, vector<1x2x128xf32>,
    %c6_i32 = arith.constant 6 : i32
    %215 = arith.index_cast %c6_i32 : i32 to index
    %c0_64 = arith.constant 0 : index
    %c0_65 = arith.constant 0 : index
    %216 = vector.load %arg1[%215, %c0_64, %c0_65] : memref<8x2x512xf32, #tpu.memory_space<vmem>>, vector<1x2x512xf32>
    %217 = vector.shape_cast %216 : vector<1x2x512xf32> to vector<2x512xf32>
    %c0_66 = arith.constant 0 : index
    %c0_67 = arith.constant 0 : index
    %218 = vector.load %arg2[%c0_66, %c0_67] : memref<128x512xf32, #tpu.memory_space<vmem>>, vector<128x512xf32>
    %cst_68 = arith.constant dense<0.000000e+00> : vector<2x512xf32>
    %219 = tpu.matmul %210, %218, %cst_68 {dimension_numbers = #tpu.dot_dimension_numbers<[1], [0], [0], [1], [0, 0, 1, 1], [], []>} : vector<2x128xf32>, vector<128x512xf32>, vector<2x512xf32> -> vector<2x512xf32>
    %220 = arith.addf %217, %219 : vector<2x512xf32>
    %221 = vector.extract_strided_slice %220 {offsets = [0, 0], sizes = [2, 128], strides = [1, 1]} : vector<2x512xf32> to vector<2x128xf32>
    %222 = arith.negf %221 : vector<2x128xf32>
    %223 = math.exp %222 : vector<2x128xf32>
    %cst_69 = arith.constant 1.000000e+00 : f32
    %224 = vector.broadcast %cst_69 : f32 to vector<2x128xf32>
    %225 = arith.addf %224, %223 : vector<2x128xf32>
    %226 = arith.divf %224, %225 : vector<2x128xf32>
    %227 = vector.extract_strided_slice %220 {offsets = [0, 128], sizes = [2, 128], strides = [1, 1]} : vector<2x512xf32> to vector<2x128xf32>
    %228 = arith.negf %227 : vector<2x128xf32>
    %229 = math.exp %228 : vector<2x128xf32>
    %cst_70 = arith.constant 1.000000e+00 : f32
    %230 = vector.broadcast %cst_70 : f32 to vector<2x128xf32>
    %231 = arith.addf %230, %229 : vector<2x128xf32>
    %232 = arith.divf %230, %231 : vector<2x128xf32>
    %233 = vector.extract_strided_slice %220 {offsets = [0, 256], sizes = [2, 128], strides = [1, 1]} : vector<2x512xf32> to vector<2x128xf32>
    %234 = math.tanh %233 : vector<2x128xf32>
    %235 = vector.extract_strided_slice %220 {offsets = [0, 384], sizes = [2, 128], strides = [1, 1]} : vector<2x512xf32> to vector<2x128xf32>
    %236 = arith.negf %235 : vector<2x128xf32>
    %237 = math.exp %236 : vector<2x128xf32>
    %cst_71 = arith.constant 1.000000e+00 : f32
    %238 = vector.broadcast %cst_71 : f32 to vector<2x128xf32>
    %239 = arith.addf %238, %237 : vector<2x128xf32>
    %240 = arith.divf %238, %239 : vector<2x128xf32>
    %241 = arith.mulf %232, %208 : vector<2x128xf32>
    %242 = arith.mulf %226, %234 : vector<2x128xf32>
    %243 = arith.addf %241, %242 : vector<2x128xf32>
    %244 = math.tanh %243 : vector<2x128xf32>
    %245 = arith.mulf %240, %244 : vector<2x128xf32>
    %246 = arith.index_cast %c6_i32 : i32 to index
    %c0_72 = arith.constant 0 : index
    %c0_73 = arith.constant 0 : index
    %247 = vector.load %arg3[%246, %c0_72, %c0_73] : memref<8x2x128xf32, #tpu.memory_space<vmem>>, vector<1x2x128xf32>
    %248 = vector.shape_cast %247 : vector<1x2x128xf32> to vector<2x128xf32>
    %249 = vector.shape_cast %245 : vector<2x128xf32> to vector<1x2x128xf32>
    tpu.vector_store %arg3[%246, %c0_72, %c0_73], %249 {strides = array<i32>} : memref<8x2x128xf32, #tpu.memory_space<vmem>>, vector<1x2x128xf32>,
    %c7_i32 = arith.constant 7 : i32
    %250 = arith.index_cast %c7_i32 : i32 to index
    %c0_74 = arith.constant 0 : index
    %c0_75 = arith.constant 0 : index
    %251 = vector.load %arg1[%250, %c0_74, %c0_75] : memref<8x2x512xf32, #tpu.memory_space<vmem>>, vector<1x2x512xf32>
    %252 = vector.shape_cast %251 : vector<1x2x512xf32> to vector<2x512xf32>
    %c0_76 = arith.constant 0 : index
    %c0_77 = arith.constant 0 : index
    %253 = vector.load %arg2[%c0_76, %c0_77] : memref<128x512xf32, #tpu.memory_space<vmem>>, vector<128x512xf32>
    %cst_78 = arith.constant dense<0.000000e+00> : vector<2x512xf32>
    %254 = tpu.matmul %245, %253, %cst_78 {dimension_numbers = #tpu.dot_dimension_numbers<[1], [0], [0], [1], [0, 0, 1, 1], [], []>} : vector<2x128xf32>, vector<128x512xf32>, vector<2x512xf32> -> vector<2x512xf32>
    %255 = arith.addf %252, %254 : vector<2x512xf32>
    %256 = vector.extract_strided_slice %255 {offsets = [0, 0], sizes = [2, 128], strides = [1, 1]} : vector<2x512xf32> to vector<2x128xf32>
    %257 = arith.negf %256 : vector<2x128xf32>
    %258 = math.exp %257 : vector<2x128xf32>
    %cst_79 = arith.constant 1.000000e+00 : f32
    %259 = vector.broadcast %cst_79 : f32 to vector<2x128xf32>
    %260 = arith.addf %259, %258 : vector<2x128xf32>
    %261 = arith.divf %259, %260 : vector<2x128xf32>
    %262 = vector.extract_strided_slice %255 {offsets = [0, 128], sizes = [2, 128], strides = [1, 1]} : vector<2x512xf32> to vector<2x128xf32>
    %263 = arith.negf %262 : vector<2x128xf32>
    %264 = math.exp %263 : vector<2x128xf32>
    %cst_80 = arith.constant 1.000000e+00 : f32
    %265 = vector.broadcast %cst_80 : f32 to vector<2x128xf32>
    %266 = arith.addf %265, %264 : vector<2x128xf32>
    %267 = arith.divf %265, %266 : vector<2x128xf32>
    %268 = vector.extract_strided_slice %255 {offsets = [0, 256], sizes = [2, 128], strides = [1, 1]} : vector<2x512xf32> to vector<2x128xf32>
    %269 = math.tanh %268 : vector<2x128xf32>
    %270 = vector.extract_strided_slice %255 {offsets = [0, 384], sizes = [2, 128], strides = [1, 1]} : vector<2x512xf32> to vector<2x128xf32>
    %271 = arith.negf %270 : vector<2x128xf32>
    %272 = math.exp %271 : vector<2x128xf32>
    %cst_81 = arith.constant 1.000000e+00 : f32
    %273 = vector.broadcast %cst_81 : f32 to vector<2x128xf32>
    %274 = arith.addf %273, %272 : vector<2x128xf32>
    %275 = arith.divf %273, %274 : vector<2x128xf32>
    %276 = arith.mulf %267, %243 : vector<2x128xf32>
    %277 = arith.mulf %261, %269 : vector<2x128xf32>
    %278 = arith.addf %276, %277 : vector<2x128xf32>
    %279 = math.tanh %278 : vector<2x128xf32>
    %280 = arith.mulf %275, %279 : vector<2x128xf32>
    %281 = arith.index_cast %c7_i32 : i32 to index
    %c0_82 = arith.constant 0 : index
    %c0_83 = arith.constant 0 : index
    %282 = vector.load %arg3[%281, %c0_82, %c0_83] : memref<8x2x128xf32, #tpu.memory_space<vmem>>, vector<1x2x128xf32>
    %283 = vector.shape_cast %282 : vector<1x2x128xf32> to vector<2x128xf32>
    %284 = vector.shape_cast %280 : vector<2x128xf32> to vector<1x2x128xf32>
    tpu.vector_store %arg3[%281, %c0_82, %c0_83], %284 {strides = array<i32>} : memref<8x2x128xf32, #tpu.memory_space<vmem>>, vector<1x2x128xf32>,
    %c8_i32 = arith.constant 8 : i32
    %c0_84 = arith.constant 0 : index
    %c0_85 = arith.constant 0 : index
    %285 = vector.load %arg4[%c0_84, %c0_85] : memref<2x128xf32, #tpu.memory_space<vmem>>, vector<2x128xf32>
    tpu.vector_store %arg4[%c0_84, %c0_85], %280 {strides = array<i32>} : memref<2x128xf32, #tpu.memory_space<vmem>>, vector<2x128xf32>,
    %c0_86 = arith.constant 0 : index
    %c0_87 = arith.constant 0 : index
    %286 = vector.load %arg5[%c0_86, %c0_87] : memref<2x128xf32, #tpu.memory_space<vmem>>, vector<2x128xf32>
    tpu.vector_store %arg5[%c0_86, %c0_87], %278 {strides = array<i32>} : memref<2x128xf32, #tpu.memory_space<vmem>>, vector<2x128xf32>,
    return
  }
  func.func @transform_0(%arg0: i32) -> (i32, i32, i32) {
    %c0_i32 = arith.constant 0 : i32
    %c0_i32_0 = arith.constant 0 : i32
    %c0_i32_1 = arith.constant 0 : i32
    return %arg0, %c0_i32, %c0_i32_0 : i32, i32, i32
  }
  func.func @transform_1(%arg0: i32) -> (i32, i32) {
    %c0_i32 = arith.constant 0 : i32
    %c0_i32_0 = arith.constant 0 : i32
    %c0_i32_1 = arith.constant 0 : i32
    return %c0_i32, %c0_i32_0 : i32, i32
  }
  func.func @transform_2(%arg0: i32) -> (i32, i32, i32) {
    %c0_i32 = arith.constant 0 : i32
    %c0_i32_0 = arith.constant 0 : i32
    %c0_i32_1 = arith.constant 0 : i32
    return %arg0, %c0_i32, %c0_i32_0 : i32, i32, i32
  }
}

</mosaic_0001>

<llo_original>
// kernel: lstm_sentiment_forward.1
$region0: #{lstm_sentiment_forward.1}
  #allocation0 [shape = 'u32[]', space=smem, size = 0x4, offset = 0x4, fixed_abs, tag = 'smem constant byte address 0x4 - core index']
  #allocation1 [shape = 'u32[72,128]{1,0:T(1,128)}', space=vmem, size = 0x9000, scoped, tag = 'internal scratch']
  #allocation2 [shape = 'f32[2,128]{1,0:T(2,128)}', space=vmem, size = 0x400, scoped, tag = 'scratch operand']
  #allocation3 [shape = 'f32[2,128]{1,0:T(2,128)}', space=vmem, size = 0x400, scoped, tag = 'scratch operand']
  %s0 = inlined_call_operand.vmem [shape: f32[8,2,512], index: 0, kind: input, shape index: {}]
  %s1 = inlined_call_operand.vmem [shape: f32[128,512], index: 1, kind: input, shape index: {}]
  %s2 = inlined_call_operand.vmem [shape: f32[8,2,128], index: 2, kind: output, shape index: {}]
  %s3 = sld [smem:[#allocation0]]
  $region22: #{lstm_sentiment_forward.1} parent=0
    _
  %s5 = ssub.s32 1, %s3
  %s6 = scalar_select 0, %s5, %s3
  // Predicated region
  $region2: #{lstm_sentiment_forward.1} parent=0 // pred_check
    _
  $region3: #{lstm_sentiment_forward.1} parent=0 // pred_check_branch
    %8 = sbr.rel (0) target = $region5
  $region4: #{lstm_sentiment_forward.1} parent=0 // pred_region
    _
  $region5: #{lstm_sentiment_forward.1} parent=0 // pred_fallthru
    _
  // Predicated region
  $region6: #{lstm_sentiment_forward.1} parent=0 // pred_check
    _
  $region7: #{lstm_sentiment_forward.1} parent=0 // pred_check_branch
    %10 = sbr.rel (0) target = $region9
  $region8: #{lstm_sentiment_forward.1} parent=0 // pred_region
    _
  $region9: #{lstm_sentiment_forward.1} parent=0 // pred_fallthru
    _
  %p11 = scmp.eq.s32.totalorder 0, 0
  // Predicated region
  $region10: #{lstm_sentiment_forward.1} parent=0 // pred_check
    %p12 = pneg %p11
  $region11: #{lstm_sentiment_forward.1} parent=0 // pred_check_branch
    %14 = sbr.rel (%p12) target = $region13
  $region12: #{lstm_sentiment_forward.1} parent=0 // pred_region
    %15 = vst [vmem:[#allocation2] sm:$0x3] 0.0
    %16 = vst [vmem:[#allocation3] sm:$0x3] 0.0
  $region13: #{lstm_sentiment_forward.1} parent=0 // pred_fallthru
    _
  %v17 = vld [vmem:[#allocation2] sm:$0x3]
  %v18 = vld [vmem:[#allocation3] sm:$0x3]
  %v19 = vld [vmem:[%s0] sm:$0xff]
  %v20 = vld [vmem:[%s1] sm:$0xff]
  %v21 = vld [vmem:[%s1 + $0x8] sm:$0xff]
  %v22 = vld [vmem:[%s1 + $0x10] sm:$0xff]
  %v23 = vld [vmem:[%s1 + $0x18] sm:$0xff]
  %v24 = vld [vmem:[%s1 + $0x20] sm:$0xff]
  %v25 = vld [vmem:[%s1 + $0x28] sm:$0xff]
  %v26 = vld [vmem:[%s1 + $0x30] sm:$0xff]
  %v27 = vld [vmem:[%s1 + $0x38] sm:$0xff]
  %v28 = vld [vmem:[%s1 + $0x40] sm:$0xff]
  %v29 = vld [vmem:[%s1 + $0x48] sm:$0xff]
  %v30 = vld [vmem:[%s1 + $0x50] sm:$0xff]
  %v31 = vld [vmem:[%s1 + $0x58] sm:$0xff]
  %v32 = vld [vmem:[%s1 + $0x60] sm:$0xff]
  %v33 = vld [vmem:[%s1 + $0x68] sm:$0xff]
  %v34 = vld [vmem:[%s1 + $0x70] sm:$0xff]
  %v35 = vld [vmem:[%s1 + $0x78] sm:$0xff]
  %v36 = vld [vmem:[%s1 + $0x80] sm:$0xff]
  %v37 = vld [vmem:[%s1 + $0x88] sm:$0xff]
  %v38 = vld [vmem:[%s1 + $0x90] sm:$0xff]
  %v39 = vld [vmem:[%s1 + $0x98] sm:$0xff]
  %v40 = vld [vmem:[%s1 + $0xa0] sm:$0xff]
  %v41 = vld [vmem:[%s1 + $0xa8] sm:$0xff]
  %v42 = vld [vmem:[%s1 + $0xb0] sm:$0xff]
  %v43 = vld [vmem:[%s1 + $0xb8] sm:$0xff]
  %v44 = vld [vmem:[%s1 + $0xc0] sm:$0xff]
  %v45 = vld [vmem:[%s1 + $0xc8] sm:$0xff]
  %v46 = vld [vmem:[%s1 + $0xd0] sm:$0xff]
  %v47 = vld [vmem:[%s1 + $0xd8] sm:$0xff]
  %v48 = vld [vmem:[%s1 + $0xe0] sm:$0xff]
  %v49 = vld [vmem:[%s1 + $0xe8] sm:$0xff]
  %v50 = vld [vmem:[%s1 + $0xf0] sm:$0xff]
  %v51 = vld [vmem:[%s1 + $0xf8] sm:$0xff]
  %v52 = vld [vmem:[%s1 + $0x100] sm:$0xff]
  %v53 = vld [vmem:[%s1 + $0x108] sm:$0xff]
  %v54 = vld [vmem:[%s1 + $0x110] sm:$0xff]
  %v55 = vld [vmem:[%s1 + $0x118] sm:$0xff]
  %v56 = vld [vmem:[%s1 + $0x120] sm:$0xff]
  %v57 = vld [vmem:[%s1 + $0x128] sm:$0xff]
  %v58 = vld [vmem:[%s1 + $0x130] sm:$0xff]
  %v59 = vld [vmem:[%s1 + $0x138] sm:$0xff]
  %v60 = vld [vmem:[%s1 + $0x140] sm:$0xff]
  %v61 = vld [vmem:[%s1 + $0x148] sm:$0xff]
  %v62 = vld [vmem:[%s1 + $0x150] sm:$0xff]
  %v63 = vld [vmem:[%s1 + $0x158] sm:$0xff]
  %v64 = vld [vmem:[%s1 + $0x160] sm:$0xff]
  %v65 = vld [vmem:[%s1 + $0x168] sm:$0xff]
  %v66 = vld [vmem:[%s1 + $0x170] sm:$0xff]
  %v67 = vld [vmem:[%s1 + $0x178] sm:$0xff]
  %v68 = vld [vmem:[%s1 + $0x180] sm:$0xff]
  %v69 = vld [vmem:[%s1 + $0x188] sm:$0xff]
  %v70 = vld [vmem:[%s1 + $0x190] sm:$0xff]
  %v71 = vld [vmem:[%s1 + $0x198] sm:$0xff]
  %v72 = vld [vmem:[%s1 + $0x1a0] sm:$0xff]
  %v73 = vld [vmem:[%s1 + $0x1a8] sm:$0xff]
  %v74 = vld [vmem:[%s1 + $0x1b0] sm:$0xff]
  %v75 = vld [vmem:[%s1 + $0x1b8] sm:$0xff]
  %v76 = vld [vmem:[%s1 + $0x1c0] sm:$0xff]
  %v77 = vld [vmem:[%s1 + $0x1c8] sm:$0xff]
  %v78 = vld [vmem:[%s1 + $0x1d0] sm:$0xff]
  %v79 = vld [vmem:[%s1 + $0x1d8] sm:$0xff]
  %v80 = vld [vmem:[%s1 + $0x1e0] sm:$0xff]
  %v81 = vld [vmem:[%s1 + $0x1e8] sm:$0xff]
  %v82 = vld [vmem:[%s1 + $0x1f0] sm:$0xff]
  %v83 = vld [vmem:[%s1 + $0x1f8] sm:$0xff]
  %84 = vmatpush.msra.mxu0 %v80
  %85 = vmatpush.msra.mxu0 %v76
  %86 = vmatpush.msra.mxu0 %v72
  %87 = vmatpush.msra.mxu0 %v68
  %88 = vmatpush.msra.mxu0 %v64
  %89 = vmatpush.msra.mxu0 %v60
  %90 = vmatpush.msra.mxu0 %v56
  %91 = vmatpush.msra.mxu0 %v52
  %92 = vmatpush.msra.mxu0 %v48
  %93 = vmatpush.msra.mxu0 %v44
  %94 = vmatpush.msra.mxu0 %v40
  %95 = vmatpush.msra.mxu0 %v36
  %96 = vmatpush.msra.mxu0 %v32
  %97 = vmatpush.msra.mxu0 %v28
  %98 = vmatpush.msra.mxu0 %v24
  %99 = vmatpush.msra.mxu0 %v20
  %100 = vmatmul.f32.gmra.mxu0 %v17
  %v101 = vpop.f32.mrf.mxu0
  %v102 = vadd.f32 0.0, %v101
  %103 = vdwg.mxu0
  %104 = vmatpush.msra.mxu0 %v81
  %105 = vmatpush.msra.mxu0 %v77
  %106 = vmatpush.msra.mxu0 %v73
  %107 = vmatpush.msra.mxu0 %v69
  %108 = vmatpush.msra.mxu0 %v65
  %109 = vmatpush.msra.mxu0 %v61
  %110 = vmatpush.msra.mxu0 %v57
  %111 = vmatpush.msra.mxu0 %v53
  %112 = vmatpush.msra.mxu0 %v49
  %113 = vmatpush.msra.mxu0 %v45
  %114 = vmatpush.msra.mxu0 %v41
  %115 = vmatpush.msra.mxu0 %v37
  %116 = vmatpush.msra.mxu0 %v33
  %117 = vmatpush.msra.mxu0 %v29
  %118 = vmatpush.msra.mxu0 %v25
  %119 = vmatpush.msra.mxu0 %v21
  %120 = vmatmul.f32.gmra.mxu0 %v17
  %v121 = vpop.f32.mrf.mxu0
  %v122 = vadd.f32 0.0, %v121
  %123 = vdwg.mxu0
  %124 = vmatpush.msra.mxu0 %v82
  %125 = vmatpush.msra.mxu0 %v78
  %126 = vmatpush.msra.mxu0 %v74
  %127 = vmatpush.msra.mxu0 %v70
  %128 = vmatpush.msra.mxu0 %v66
  %129 = vmatpush.msra.mxu0 %v62
  %130 = vmatpush.msra.mxu0 %v58
  %131 = vmatpush.msra.mxu0 %v54
  %132 = vmatpush.msra.mxu0 %v50
  %133 = vmatpush.msra.mxu0 %v46
  %134 = vmatpush.msra.mxu0 %v42
  %135 = vmatpush.msra.mxu0 %v38
  %136 = vmatpush.msra.mxu0 %v34
  %137 = vmatpush.msra.mxu0 %v30
  %138 = vmatpush.msra.mxu0 %v26
  %139 = vmatpush.msra.mxu0 %v22
  %140 = vmatmul.f32.gmra.mxu0 %v17
  %v141 = vpop.f32.mrf.mxu0
  %v142 = vadd.f32 0.0, %v141
  %143 = vdwg.mxu0
  %144 = vmatpush.msra.mxu0 %v83
  %145 = vmatpush.msra.mxu0 %v79
  %146 = vmatpush.msra.mxu0 %v75
  %147 = vmatpush.msra.mxu0 %v71
  %148 = vmatpush.msra.mxu0 %v67
  %149 = vmatpush.msra.mxu0 %v63
  %150 = vmatpush.msra.mxu0 %v59
  %151 = vmatpush.msra.mxu0 %v55
  %152 = vmatpush.msra.mxu0 %v51
  %153 = vmatpush.msra.mxu0 %v47
  %154 = vmatpush.msra.mxu0 %v43
  %155 = vmatpush.msra.mxu0 %v39
  %156 = vmatpush.msra.mxu0 %v35
  %157 = vmatpush.msra.mxu0 %v31
  %158 = vmatpush.msra.mxu0 %v27
  %159 = vmatpush.msra.mxu0 %v23
  %160 = vmatmul.f32.gmra.mxu0 %v17
  %v161 = vpop.f32.mrf.mxu0
  %v162 = vadd.f32 0.0, %v161
  %163 = vdwg.mxu0
  %v168 = vrot.slane %v122, 6
  %v169 = vrot.slane %v142, 4
  %v170 = vrot.slane %v162, 2
  %vm171 = vcmask 1041408
  %v172 = vsel %vm171, %v102, %v168
  %vm173 = vcmask 1045508
  %v174 = vsel %vm173, %v169, %v170
  %vm175 = vcmask 1043456
  %v176 = vsel %vm175, %v172, %v174
  %v178 = vadd.f32 %v19, %v176
  %v179 = vxor.u32 %v178, 2147483648
  %v180 = vmul.f32 %v179, 1.442695
  %v181 = vpow.pop %v180
  %v182 = vadd.f32 %v181, 1.0
  %v183 = vrcp.pop %v182
  %v184 = vmul.f32 %v182, %v183
  %v185 = vsub.f32 1.0, %v184
  %v186 = vmul.f32 %v183, %v185
  %v187 = vadd.f32 %v183, %v186
  %vm188 = vweird.f32 %v182
  %vm189 = vweird.f32 %v183
  %vm190 = vmor %vm188, %vm189
  %v191 = vsel %vm190, %v183, %v187
  %v192 = vand.u32 2147483647, %v182
  %vm193 = vcmp.eq.f32.partialorder %v192, 8.507059e+37
  %v194 = vand.u32 %v182, 2147483648
  %v195 = vor.u32 1.1754944e-38, %v194
  %v196 = vsel %vm193, %v195, %v191
  %v197 = vmul.f32 1.0, %v196
  %v199 = vrot.slane %v178, 2
  %v201 = vxor.u32 %v199, 2147483648
  %v202 = vmul.f32 %v201, 1.442695
  %v203 = vpow.pop %v202
  %v204 = vadd.f32 %v203, 1.0
  %v205 = vrcp.pop %v204
  %v206 = vmul.f32 %v204, %v205
  %v207 = vsub.f32 1.0, %v206
  %v208 = vmul.f32 %v205, %v207
  %v209 = vadd.f32 %v205, %v208
  %vm210 = vweird.f32 %v204
  %vm211 = vweird.f32 %v205
  %vm212 = vmor %vm210, %vm211
  %v213 = vsel %vm212, %v205, %v209
  %v214 = vand.u32 2147483647, %v204
  %vm215 = vcmp.eq.f32.partialorder %v214, 8.507059e+37
  %v216 = vand.u32 %v204, 2147483648
  %v217 = vor.u32 1.1754944e-38, %v216
  %v218 = vsel %vm215, %v217, %v213
  %v219 = vmul.f32 1.0, %v218
  %v220 = vrot.slane %v178, 4
  %v222 = vtanh.pop %v220
  %v223 = vrot.slane %v178, 6
  %v225 = vxor.u32 %v223, 2147483648
  %v226 = vmul.f32 %v225, 1.442695
  %v227 = vpow.pop %v226
  %v228 = vadd.f32 %v227, 1.0
  %v229 = vrcp.pop %v228
  %v230 = vmul.f32 %v228, %v229
  %v231 = vsub.f32 1.0, %v230
  %v232 = vmul.f32 %v229, %v231
  %v233 = vadd.f32 %v229, %v232
  %vm234 = vweird.f32 %v228
  %vm235 = vweird.f32 %v229
  %vm236 = vmor %vm234, %vm235
  %v237 = vsel %vm236, %v229, %v233
  %v238 = vand.u32 2147483647, %v228
  %vm239 = vcmp.eq.f32.partialorder %v238, 8.507059e+37
  %v240 = vand.u32 %v228, 2147483648
  %v241 = vor.u32 1.1754944e-38, %v240
  %v242 = vsel %vm239, %v241, %v237
  %v243 = vmul.f32 1.0, %v242
  %v244 = vmul.f32 %v219, %v18
  %v245 = vmul.f32 %v197, %v222
  %v246 = vadd.f32 %v244, %v245
  %v247 = vtanh.pop %v246
  %v248 = vmul.f32 %v243, %v247
  %249 = vst [vmem:[%s2] sm:$0x3] %v248
  %s250 = scalar_lea.vmem %s0, 8
  %v251 = vld [vmem:[%s250] sm:$0xff]
  %v252 = vld [vmem:[%s1] sm:$0xff]
  %v253 = vld [vmem:[%s1 + $0x8] sm:$0xff]
  %v254 = vld [vmem:[%s1 + $0x10] sm:$0xff]
  %v255 = vld [vmem:[%s1 + $0x18] sm:$0xff]
  %v256 = vld [vmem:[%s1 + $0x20] sm:$0xff]
  %v257 = vld [vmem:[%s1 + $0x28] sm:$0xff]
  %v258 = vld [vmem:[%s1 + $0x30] sm:$0xff]
  %v259 = vld [vmem:[%s1 + $0x38] sm:$0xff]
  %v260 = vld [vmem:[%s1 + $0x40] sm:$0xff]
  %v261 = vld [vmem:[%s1 + $0x48] sm:$0xff]
  %v262 = vld [vmem:[%s1 + $0x50] sm:$0xff]
  %v263 = vld [vmem:[%s1 + $0x58] sm:$0xff]
  %v264 = vld [vmem:[%s1 + $0x60] sm:$0xff]
  %v265 = vld [vmem:[%s1 + $0x68] sm:$0xff]
  %v266 = vld [vmem:[%s1 + $0x70] sm:$0xff]
  %v267 = vld [vmem:[%s1 + $0x78] sm:$0xff]
  %v268 = vld [vmem:[%s1 + $0x80] sm:$0xff]
  %v269 = vld [vmem:[%s1 + $0x88] sm:$0xff]
  %v270 = vld [vmem:[%s1 + $0x90] sm:$0xff]
  %v271 = vld [vmem:[%s1 + $0x98] sm:$0xff]
  %v272 = vld [vmem:[%s1 + $0xa0] sm:$0xff]
  %v273 = vld [vmem:[%s1 + $0xa8] sm:$0xff]
  %v274 = vld [vmem:[%s1 + $0xb0] sm:$0xff]
  %v275 = vld [vmem:[%s1 + $0xb8] sm:$0xff]
  %v276 = vld [vmem:[%s1 + $0xc0] sm:$0xff]
  %v277 = vld [vmem:[%s1 + $0xc8] sm:$0xff]
  %v278 = vld [vmem:[%s1 + $0xd0] sm:$0xff]
  %v279 = vld [vmem:[%s1 + $0xd8] sm:$0xff]
  %v280 = vld [vmem:[%s1 + $0xe0] sm:$0xff]
  %v281 = vld [vmem:[%s1 + $0xe8] sm:$0xff]
  %v282 = vld [vmem:[%s1 + $0xf0] sm:$0xff]
  %v283 = vld [vmem:[%s1 + $0xf8] sm:$0xff]
  %v284 = vld [vmem:[%s1 + $0x100] sm:$0xff]
  %v285 = vld [vmem:[%s1 + $0x108] sm:$0xff]
  %v286 = vld [vmem:[%s1 + $0x110] sm:$0xff]
  %v287 = vld [vmem:[%s1 + $0x118] sm:$0xff]
  %v288 = vld [vmem:[%s1 + $0x120] sm:$0xff]
  %v289 = vld [vmem:[%s1 + $0x128] sm:$0xff]
  %v290 = vld [vmem:[%s1 + $0x130] sm:$0xff]
  %v291 = vld [vmem:[%s1 + $0x138] sm:$0xff]
  %v292 = vld [vmem:[%s1 + $0x140] sm:$0xff]
  %v293 = vld [vmem:[%s1 + $0x148] sm:$0xff]
  %v294 = vld [vmem:[%s1 + $0x150] sm:$0xff]
  %v295 = vld [vmem:[%s1 + $0x158] sm:$0xff]
  %v296 = vld [vmem:[%s1 + $0x160] sm:$0xff]
  %v297 = vld [vmem:[%s1 + $0x168] sm:$0xff]
  %v298 = vld [vmem:[%s1 + $0x170] sm:$0xff]
  %v299 = vld [vmem:[%s1 + $0x178] sm:$0xff]
  %v300 = vld [vmem:[%s1 + $0x180] sm:$0xff]
  %v301 = vld [vmem:[%s1 + $0x188] sm:$0xff]
  %v302 = vld [vmem:[%s1 + $0x190] sm:$0xff]
  %v303 = vld [vmem:[%s1 + $0x198] sm:$0xff]
  %v304 = vld [vmem:[%s1 + $0x1a0] sm:$0xff]
  %v305 = vld [vmem:[%s1 + $0x1a8] sm:$0xff]
  %v306 = vld [vmem:[%s1 + $0x1b0] sm:$0xff]
  %v307 = vld [vmem:[%s1 + $0x1b8] sm:$0xff]
  %v308 = vld [vmem:[%s1 + $0x1c0] sm:$0xff]
  %v309 = vld [vmem:[%s1 + $0x1c8] sm:$0xff]
  %v310 = vld [vmem:[%s1 + $0x1d0] sm:$0xff]
  %v311 = vld [vmem:[%s1 + $0x1d8] sm:$0xff]
  %v312 = vld [vmem:[%s1 + $0x1e0] sm:$0xff]
  %v313 = vld [vmem:[%s1 + $0x1e8] sm:$0xff]
  %v314 = vld [vmem:[%s1 + $0x1f0] sm:$0xff]
  %v315 = vld [vmem:[%s1 + $0x1f8] sm:$0xff]
  %316 = vmatpush.msra.mxu0 %v312
  %317 = vmatpush.msra.mxu0 %v308
  %318 = vmatpush.msra.mxu0 %v304
  %319 = vmatpush.msra.mxu0 %v300
  %320 = vmatpush.msra.mxu0 %v296
  %321 = vmatpush.msra.mxu0 %v292
  %322 = vmatpush.msra.mxu0 %v288
  %323 = vmatpush.msra.mxu0 %v284
  %324 = vmatpush.msra.mxu0 %v280
  %325 = vmatpush.msra.mxu0 %v276
  %326 = vmatpush.msra.mxu0 %v272
  %327 = vmatpush.msra.mxu0 %v268
  %328 = vmatpush.msra.mxu0 %v264
  %329 = vmatpush.msra.mxu0 %v260
  %330 = vmatpush.msra.mxu0 %v256
  %331 = vmatpush.msra.mxu0 %v252
  %332 = vmatmul.f32.gmra.mxu0 %v248
  %v333 = vpop.f32.mrf.mxu0
  %v334 = vadd.f32 0.0, %v333
  %335 = vdwg.mxu0
  %336 = vmatpush.msra.mxu0 %v313
  %337 = vmatpush.msra.mxu0 %v309
  %338 = vmatpush.msra.mxu0 %v305
  %339 = vmatpush.msra.mxu0 %v301
  %340 = vmatpush.msra.mxu0 %v297
  %341 = vmatpush.msra.mxu0 %v293
  %342 = vmatpush.msra.mxu0 %v289
  %343 = vmatpush.msra.mxu0 %v285
  %344 = vmatpush.msra.mxu0 %v281
  %345 = vmatpush.msra.mxu0 %v277
  %346 = vmatpush.msra.mxu0 %v273
  %347 = vmatpush.msra.mxu0 %v269
  %348 = vmatpush.msra.mxu0 %v265
  %349 = vmatpush.msra.mxu0 %v261
  %350 = vmatpush.msra.mxu0 %v257
  %351 = vmatpush.msra.mxu0 %v253
  %352 = vmatmul.f32.gmra.mxu0 %v248
  %v353 = vpop.f32.mrf.mxu0
  %v354 = vadd.f32 0.0, %v353
  %355 = vdwg.mxu0
  %356 = vmatpush.msra.mxu0 %v314
  %357 = vmatpush.msra.mxu0 %v310
  %358 = vmatpush.msra.mxu0 %v306
  %359 = vmatpush.msra.mxu0 %v302
  %360 = vmatpush.msra.mxu0 %v298
  %361 = vmatpush.msra.mxu0 %v294
  %362 = vmatpush.msra.mxu0 %v290
  %363 = vmatpush.msra.mxu0 %v286
  %364 = vmatpush.msra.mxu0 %v282
  %365 = vmatpush.msra.mxu0 %v278
  %366 = vmatpush.msra.mxu0 %v274
  %367 = vmatpush.msra.mxu0 %v270
  %368 = vmatpush.msra.mxu0 %v266
  %369 = vmatpush.msra.mxu0 %v262
  %370 = vmatpush.msra.mxu0 %v258
  %371 = vmatpush.msra.mxu0 %v254
  %372 = vmatmul.f32.gmra.mxu0 %v248
  %v373 = vpop.f32.mrf.mxu0
  %v374 = vadd.f32 0.0, %v373
  %375 = vdwg.mxu0
  %376 = vmatpush.msra.mxu0 %v315
  %377 = vmatpush.msra.mxu0 %v311
  %378 = vmatpush.msra.mxu0 %v307
  %379 = vmatpush.msra.mxu0 %v303
  %380 = vmatpush.msra.mxu0 %v299
  %381 = vmatpush.msra.mxu0 %v295
  %382 = vmatpush.msra.mxu0 %v291
  %383 = vmatpush.msra.mxu0 %v287
  %384 = vmatpush.msra.mxu0 %v283
  %385 = vmatpush.msra.mxu0 %v279
  %386 = vmatpush.msra.mxu0 %v275
  %387 = vmatpush.msra.mxu0 %v271
  %388 = vmatpush.msra.mxu0 %v267
  %389 = vmatpush.msra.mxu0 %v263
  %390 = vmatpush.msra.mxu0 %v259
  %391 = vmatpush.msra.mxu0 %v255
  %392 = vmatmul.f32.gmra.mxu0 %v248
  %v393 = vpop.f32.mrf.mxu0
  %v394 = vadd.f32 0.0, %v393
  %395 = vdwg.mxu0
  %v400 = vrot.slane %v354, 6
  %v401 = vrot.slane %v374, 4
  %v402 = vrot.slane %v394, 2
  %v403 = vsel %vm171, %v334, %v400
  %v404 = vsel %vm173, %v401, %v402
  %v405 = vsel %vm175, %v403, %v404
  %v407 = vadd.f32 %v251, %v405
  %v408 = vxor.u32 %v407, 2147483648
  %v409 = vmul.f32 %v408, 1.442695
  %v410 = vpow.pop %v409
  %v411 = vadd.f32 %v410, 1.0
  %v412 = vrcp.pop %v411
  %v413 = vmul.f32 %v411, %v412
  %v414 = vsub.f32 1.0, %v413
  %v415 = vmul.f32 %v412, %v414
  %v416 = vadd.f32 %v412, %v415
  %vm417 = vweird.f32 %v411
  %vm418 = vweird.f32 %v412
  %vm419 = vmor %vm417, %vm418
  %v420 = vsel %vm419, %v412, %v416
  %v421 = vand.u32 2147483647, %v411
  %vm422 = vcmp.eq.f32.partialorder %v421, 8.507059e+37
  %v423 = vand.u32 %v411, 2147483648
  %v424 = vor.u32 1.1754944e-38, %v423
  %v425 = vsel %vm422, %v424, %v420
  %v426 = vmul.f32 1.0, %v425
  %v428 = vrot.slane %v407, 2
  %v430 = vxor.u32 %v428, 2147483648
  %v431 = vmul.f32 %v430, 1.442695
  %v432 = vpow.pop %v431
  %v433 = vadd.f32 %v432, 1.0
  %v434 = vrcp.pop %v433
  %v435 = vmul.f32 %v433, %v434
  %v436 = vsub.f32 1.0, %v435
  %v437 = vmul.f32 %v434, %v436
  %v438 = vadd.f32 %v434, %v437
  %vm439 = vweird.f32 %v433
  %vm440 = vweird.f32 %v434
  %vm441 = vmor %vm439, %vm440
  %v442 = vsel %vm441, %v434, %v438
  %v443 = vand.u32 2147483647, %v433
  %vm444 = vcmp.eq.f32.partialorder %v443, 8.507059e+37
  %v445 = vand.u32 %v433, 2147483648
  %v446 = vor.u32 1.1754944e-38, %v445
  %v447 = vsel %vm444, %v446, %v442
  %v448 = vmul.f32 1.0, %v447
  %v449 = vrot.slane %v407, 4
  %v451 = vtanh.pop %v449
  %v452 = vrot.slane %v407, 6
  %v454 = vxor.u32 %v452, 2147483648
  %v455 = vmul.f32 %v454, 1.442695
  %v456 = vpow.pop %v455
  %v457 = vadd.f32 %v456, 1.0
  %v458 = vrcp.pop %v457
  %v459 = vmul.f32 %v457, %v458
  %v460 = vsub.f32 1.0, %v459
  %v461 = vmul.f32 %v458, %v460
  %v462 = vadd.f32 %v458, %v461
  %vm463 = vweird.f32 %v457
  %vm464 = vweird.f32 %v458
  %vm465 = vmor %vm463, %vm464
  %v466 = vsel %vm465, %v458, %v462
  %v467 = vand.u32 2147483647, %v457
  %vm468 = vcmp.eq.f32.partialorder %v467, 8.507059e+37
  %v469 = vand.u32 %v457, 2147483648
  %v470 = vor.u32 1.1754944e-38, %v469
  %v471 = vsel %vm468, %v470, %v466
  %v472 = vmul.f32 1.0, %v471
  %v473 = vmul.f32 %v448, %v246
  %v474 = vmul.f32 %v426, %v451
  %v475 = vadd.f32 %v473, %v474
  %v476 = vtanh.pop %v475
  %v477 = vmul.f32 %v472, %v476
  %s478 = scalar_lea.vmem %s2, 2
  %479 = vst [vmem:[%s478] sm:$0x3] %v477
  %s480 = scalar_lea.vmem %s0, 16
  %v481 = vld [vmem:[%s480] sm:$0xff]
  %v482 = vld [vmem:[%s1] sm:$0xff]
  %v483 = vld [vmem:[%s1 + $0x8] sm:$0xff]
  %v484 = vld [vmem:[%s1 + $0x10] sm:$0xff]
  %v485 = vld [vmem:[%s1 + $0x18] sm:$0xff]
  %v486 = vld [vmem:[%s1 + $0x20] sm:$0xff]
  %v487 = vld [vmem:[%s1 + $0x28] sm:$0xff]
  %v488 = vld [vmem:[%s1 + $0x30] sm:$0xff]
  %v489 = vld [vmem:[%s1 + $0x38] sm:$0xff]
  %v490 = vld [vmem:[%s1 + $0x40] sm:$0xff]
  %v491 = vld [vmem:[%s1 + $0x48] sm:$0xff]
  %v492 = vld [vmem:[%s1 + $0x50] sm:$0xff]
  %v493 = vld [vmem:[%s1 + $0x58] sm:$0xff]
  %v494 = vld [vmem:[%s1 + $0x60] sm:$0xff]
  %v495 = vld [vmem:[%s1 + $0x68] sm:$0xff]
  %v496 = vld [vmem:[%s1 + $0x70] sm:$0xff]
  %v497 = vld [vmem:[%s1 + $0x78] sm:$0xff]
  %v498 = vld [vmem:[%s1 + $0x80] sm:$0xff]
  %v499 = vld [vmem:[%s1 + $0x88] sm:$0xff]
  %v500 = vld [vmem:[%s1 + $0x90] sm:$0xff]
  %v501 = vld [vmem:[%s1 + $0x98] sm:$0xff]
  %v502 = vld [vmem:[%s1 + $0xa0] sm:$0xff]
  %v503 = vld [vmem:[%s1 + $0xa8] sm:$0xff]
  %v504 = vld [vmem:[%s1 + $0xb0] sm:$0xff]
  %v505 = vld [vmem:[%s1 + $0xb8] sm:$0xff]
  %v506 = vld [vmem:[%s1 + $0xc0] sm:$0xff]
  %v507 = vld [vmem:[%s1 + $0xc8] sm:$0xff]
  %v508 = vld [vmem:[%s1 + $0xd0] sm:$0xff]
  %v509 = vld [vmem:[%s1 + $0xd8] sm:$0xff]
  %v510 = vld [vmem:[%s1 + $0xe0] sm:$0xff]
  %v511 = vld [vmem:[%s1 + $0xe8] sm:$0xff]
  %v512 = vld [vmem:[%s1 + $0xf0] sm:$0xff]
  %v513 = vld [vmem:[%s1 + $0xf8] sm:$0xff]
  %v514 = vld [vmem:[%s1 + $0x100] sm:$0xff]
  %v515 = vld [vmem:[%s1 + $0x108] sm:$0xff]
  %v516 = vld [vmem:[%s1 + $0x110] sm:$0xff]
  %v517 = vld [vmem:[%s1 + $0x118] sm:$0xff]
  %v518 = vld [vmem:[%s1 + $0x120] sm:$0xff]
  %v519 = vld [vmem:[%s1 + $0x128] sm:$0xff]
  %v520 = vld [vmem:[%s1 + $0x130] sm:$0xff]
  %v521 = vld [vmem:[%s1 + $0x138] sm:$0xff]
  %v522 = vld [vmem:[%s1 + $0x140] sm:$0xff]
  %v523 = vld [vmem:[%s1 + $0x148] sm:$0xff]
  %v524 = vld [vmem:[%s1 + $0x150] sm:$0xff]
  %v525 = vld [vmem:[%s1 + $0x158] sm:$0xff]
  %v526 = vld [vmem:[%s1 + $0x160] sm:$0xff]
  %v527 = vld [vmem:[%s1 + $0x168] sm:$0xff]
  %v528 = vld [vmem:[%s1 + $0x170] sm:$0xff]
  %v529 = vld [vmem:[%s1 + $0x178] sm:$0xff]
  %v530 = vld [vmem:[%s1 + $0x180] sm:$0xff]
  %v531 = vld [vmem:[%s1 + $0x188] sm:$0xff]
  %v532 = vld [vmem:[%s1 + $0x190] sm:$0xff]
  %v533 = vld [vmem:[%s1 + $0x198] sm:$0xff]
  %v534 = vld [vmem:[%s1 + $0x1a0] sm:$0xff]
  %v535 = vld [vmem:[%s1 + $0x1a8] sm:$0xff]
  %v536 = vld [vmem:[%s1 + $0x1b0] sm:$0xff]
  %v537 = vld [vmem:[%s1 + $0x1b8] sm:$0xff]
  %v538 = vld [vmem:[%s1 + $0x1c0] sm:$0xff]
  %v539 = vld [vmem:[%s1 + $0x1c8] sm:$0xff]
  %v540 = vld [vmem:[%s1 + $0x1d0] sm:$0xff]
  %v541 = vld [vmem:[%s1 + $0x1d8] sm:$0xff]
  %v542 = vld [vmem:[%s1 + $0x1e0] sm:$0xff]
  %v543 = vld [vmem:[%s1 + $0x1e8] sm:$0xff]
  %v544 = vld [vmem:[%s1 + $0x1f0] sm:$0xff]
  %v545 = vld [vmem:[%s1 + $0x1f8] sm:$0xff]
  %546 = vmatpush.msra.mxu0 %v542
  %547 = vmatpush.msra.mxu0 %v538
  %548 = vmatpush.msra.mxu0 %v534
  %549 = vmatpush.msra.mxu0 %v530
  %550 = vmatpush.msra.mxu0 %v526
  %551 = vmatpush.msra.mxu0 %v522
  %552 = vmatpush.msra.mxu0 %v518
  %553 = vmatpush.msra.mxu0 %v514
  %554 = vmatpush.msra.mxu0 %v510
  %555 = vmatpush.msra.mxu0 %v506
  %556 = vmatpush.msra.mxu0 %v502
  %557 = vmatpush.msra.mxu0 %v498
  %558 = vmatpush.msra.mxu0 %v494
  %559 = vmatpush.msra.mxu0 %v490
  %560 = vmatpush.msra.mxu0 %v486
  %561 = vmatpush.msra.mxu0 %v482
  %562 = vmatmul.f32.gmra.mxu0 %v477
  %v563 = vpop.f32.mrf.mxu0
  %v564 = vadd.f32 0.0, %v563
  %565 = vdwg.mxu0
  %566 = vmatpush.msra.mxu0 %v543
  %567 = vmatpush.msra.mxu0 %v539
  %568 = vmatpush.msra.mxu0 %v535
  %569 = vmatpush.msra.mxu0 %v531
  %570 = vmatpush.msra.mxu0 %v527
  %571 = vmatpush.msra.mxu0 %v523
  %572 = vmatpush.msra.mxu0 %v519
  %573 = vmatpush.msra.mxu0 %v515
  %574 = vmatpush.msra.mxu0 %v511
  %575 = vmatpush.msra.mxu0 %v507
  %576 = vmatpush.msra.mxu0 %v503
  %577 = vmatpush.msra.mxu0 %v499
  %578 = vmatpush.msra.mxu0 %v495
  %579 = vmatpush.msra.mxu0 %v491
  %580 = vmatpush.msra.mxu0 %v487
  %581 = vmatpush.msra.mxu0 %v483
  %582 = vmatmul.f32.gmra.mxu0 %v477
  %v583 = vpop.f32.mrf.mxu0
  %v584 = vadd.f32 0.0, %v583
  %585 = vdwg.mxu0
  %586 = vmatpush.msra.mxu0 %v544
  %587 = vmatpush.msra.mxu0 %v540
  %588 = vmatpush.msra.mxu0 %v536
  %589 = vmatpush.msra.mxu0 %v532
  %590 = vmatpush.msra.mxu0 %v528
  %591 = vmatpush.msra.mxu0 %v524
  %592 = vmatpush.msra.mxu0 %v520
  %593 = vmatpush.msra.mxu0 %v516
  %594 = vmatpush.msra.mxu0 %v512
  %595 = vmatpush.msra.mxu0 %v508
  %596 = vmatpush.msra.mxu0 %v504
  %597 = vmatpush.msra.mxu0 %v500
  %598 = vmatpush.msra.mxu0 %v496
  %599 = vmatpush.msra.mxu0 %v492
  %600 = vmatpush.msra.mxu0 %v488
  %601 = vmatpush.msra.mxu0 %v484
  %602 = vmatmul.f32.gmra.mxu0 %v477
  %v603 = vpop.f32.mrf.mxu0
  %v604 = vadd.f32 0.0, %v603
  %605 = vdwg.mxu0
  %606 = vmatpush.msra.mxu0 %v545
  %607 = vmatpush.msra.mxu0 %v541
  %608 = vmatpush.msra.mxu0 %v537
  %609 = vmatpush.msra.mxu0 %v533
  %610 = vmatpush.msra.mxu0 %v529
  %611 = vmatpush.msra.mxu0 %v525
  %612 = vmatpush.msra.mxu0 %v521
  %613 = vmatpush.msra.mxu0 %v517
  %614 = vmatpush.msra.mxu0 %v513
  %615 = vmatpush.msra.mxu0 %v509
  %616 = vmatpush.msra.mxu0 %v505
  %617 = vmatpush.msra.mxu0 %v501
  %618 = vmatpush.msra.mxu0 %v497
  %619 = vmatpush.msra.mxu0 %v493
  %620 = vmatpush.msra.mxu0 %v489
  %621 = vmatpush.msra.mxu0 %v485
  %622 = vmatmul.f32.gmra.mxu0 %v477
  %v623 = vpop.f32.mrf.mxu0
  %v624 = vadd.f32 0.0, %v623
  %625 = vdwg.mxu0
  %v630 = vrot.slane %v584, 6
  %v631 = vrot.slane %v604, 4
  %v632 = vrot.slane %v624, 2
  %v633 = vsel %vm171, %v564, %v630
  %v634 = vsel %vm173, %v631, %v632
  %v635 = vsel %vm175, %v633, %v634
  %v637 = vadd.f32 %v481, %v635
  %v638 = vxor.u32 %v637, 2147483648
  %v639 = vmul.f32 %v638, 1.442695
  %v640 = vpow.pop %v639
  %v641 = vadd.f32 %v640, 1.0
  %v642 = vrcp.pop %v641
  %v643 = vmul.f32 %v641, %v642
  %v644 = vsub.f32 1.0, %v643
  %v645 = vmul.f32 %v642, %v644
  %v646 = vadd.f32 %v642, %v645
  %vm647 = vweird.f32 %v641
  %vm648 = vweird.f32 %v642
  %vm649 = vmor %vm647, %vm648
  %v650 = vsel %vm649, %v642, %v646
  %v651 = vand.u32 2147483647, %v641
  %vm652 = vcmp.eq.f32.partialorder %v651, 8.507059e+37
  %v653 = vand.u32 %v641, 2147483648
  %v654 = vor.u32 1.1754944e-38, %v653
  %v655 = vsel %vm652, %v654, %v650
  %v656 = vmul.f32 1.0, %v655
  %v658 = vrot.slane %v637, 2
  %v660 = vxor.u32 %v658, 2147483648
  %v661 = vmul.f32 %v660, 1.442695
  %v662 = vpow.pop %v661
  %v663 = vadd.f32 %v662, 1.0
  %v664 = vrcp.pop %v663
  %v665 = vmul.f32 %v663, %v664
  %v666 = vsub.f32 1.0, %v665
  %v667 = vmul.f32 %v664, %v666
  %v668 = vadd.f32 %v664, %v667
  %vm669 = vweird.f32 %v663
  %vm670 = vweird.f32 %v664
  %vm671 = vmor %vm669, %vm670
  %v672 = vsel %vm671, %v664, %v668
  %v673 = vand.u32 2147483647, %v663
  %vm674 = vcmp.eq.f32.partialorder %v673, 8.507059e+37
  %v675 = vand.u32 %v663, 2147483648
  %v676 = vor.u32 1.1754944e-38, %v675
  %v677 = vsel %vm674, %v676, %v672
  %v678 = vmul.f32 1.0, %v677
  %v679 = vrot.slane %v637, 4
  %v681 = vtanh.pop %v679
  %v682 = vrot.slane %v637, 6
  %v684 = vxor.u32 %v682, 2147483648
  %v685 = vmul.f32 %v684, 1.442695
  %v686 = vpow.pop %v685
  %v687 = vadd.f32 %v686, 1.0
  %v688 = vrcp.pop %v687
  %v689 = vmul.f32 %v687, %v688
  %v690 = vsub.f32 1.0, %v689
  %v691 = vmul.f32 %v688, %v690
  %v692 = vadd.f32 %v688, %v691
  %vm693 = vweird.f32 %v687
  %vm694 = vweird.f32 %v688
  %vm695 = vmor %vm693, %vm694
  %v696 = vsel %vm695, %v688, %v692
  %v697 = vand.u32 2147483647, %v687
  %vm698 = vcmp.eq.f32.partialorder %v697, 8.507059e+37
  %v699 = vand.u32 %v687, 2147483648
  %v700 = vor.u32 1.1754944e-38, %v699
  %v701 = vsel %vm698, %v700, %v696
  %v702 = vmul.f32 1.0, %v701
  %v703 = vmul.f32 %v678, %v475
  %v704 = vmul.f32 %v656, %v681
  %v705 = vadd.f32 %v703, %v704
  %v706 = vtanh.pop %v705
  %v707 = vmul.f32 %v702, %v706
  %s708 = scalar_lea.vmem %s2, 4
  %709 = vst [vmem:[%s708] sm:$0x3] %v707
  %s710 = scalar_lea.vmem %s0, 24
  %v711 = vld [vmem:[%s710] sm:$0xff]
  %v712 = vld [vmem:[%s1] sm:$0xff]
  %v713 = vld [vmem:[%s1 + $0x8] sm:$0xff]
  %v714 = vld [vmem:[%s1 + $0x10] sm:$0xff]
  %v715 = vld [vmem:[%s1 + $0x18] sm:$0xff]
  %v716 = vld [vmem:[%s1 + $0x20] sm:$0xff]
  %v717 = vld [vmem:[%s1 + $0x28] sm:$0xff]
  %v718 = vld [vmem:[%s1 + $0x30] sm:$0xff]
  %v719 = vld [vmem:[%s1 + $0x38] sm:$0xff]
  %v720 = vld [vmem:[%s1 + $0x40] sm:$0xff]
  %v721 = vld [vmem:[%s1 + $0x48] sm:$0xff]
  %v722 = vld [vmem:[%s1 + $0x50] sm:$0xff]
  %v723 = vld [vmem:[%s1 + $0x58] sm:$0xff]
  %v724 = vld [vmem:[%s1 + $0x60] sm:$0xff]
  %v725 = vld [vmem:[%s1 + $0x68] sm:$0xff]
  %v726 = vld [vmem:[%s1 + $0x70] sm:$0xff]
  %v727 = vld [vmem:[%s1 + $0x78] sm:$0xff]
  %v728 = vld [vmem:[%s1 + $0x80] sm:$0xff]
  %v729 = vld [vmem:[%s1 + $0x88] sm:$0xff]
  %v730 = vld [vmem:[%s1 + $0x90] sm:$0xff]
  %v731 = vld [vmem:[%s1 + $0x98] sm:$0xff]
  %v732 = vld [vmem:[%s1 + $0xa0] sm:$0xff]
  %v733 = vld [vmem:[%s1 + $0xa8] sm:$0xff]
  %v734 = vld [vmem:[%s1 + $0xb0] sm:$0xff]
  %v735 = vld [vmem:[%s1 + $0xb8] sm:$0xff]
  %v736 = vld [vmem:[%s1 + $0xc0] sm:$0xff]
  %v737 = vld [vmem:[%s1 + $0xc8] sm:$0xff]
  %v738 = vld [vmem:[%s1 + $0xd0] sm:$0xff]
  %v739 = vld [vmem:[%s1 + $0xd8] sm:$0xff]
  %v740 = vld [vmem:[%s1 + $0xe0] sm:$0xff]
  %v741 = vld [vmem:[%s1 + $0xe8] sm:$0xff]
  %v742 = vld [vmem:[%s1 + $0xf0] sm:$0xff]
  %v743 = vld [vmem:[%s1 + $0xf8] sm:$0xff]
  %v744 = vld [vmem:[%s1 + $0x100] sm:$0xff]
  %v745 = vld [vmem:[%s1 + $0x108] sm:$0xff]
  %v746 = vld [vmem:[%s1 + $0x110] sm:$0xff]
  %v747 = vld [vmem:[%s1 + $0x118] sm:$0xff]
  %v748 = vld [vmem:[%s1 + $0x120] sm:$0xff]
  %v749 = vld [vmem:[%s1 + $0x128] sm:$0xff]
  %v750 = vld [vmem:[%s1 + $0x130] sm:$0xff]
  %v751 = vld [vmem:[%s1 + $0x138] sm:$0xff]
  %v752 = vld [vmem:[%s1 + $0x140] sm:$0xff]
  %v753 = vld [vmem:[%s1 + $0x148] sm:$0xff]
  %v754 = vld [vmem:[%s1 + $0x150] sm:$0xff]
  %v755 = vld [vmem:[%s1 + $0x158] sm:$0xff]
  %v756 = vld [vmem:[%s1 + $0x160] sm:$0xff]
  %v757 = vld [vmem:[%s1 + $0x168] sm:$0xff]
  %v758 = vld [vmem:[%s1 + $0x170] sm:$0xff]
  %v759 = vld [vmem:[%s1 + $0x178] sm:$0xff]
  %v760 = vld [vmem:[%s1 + $0x180] sm:$0xff]
  %v761 = vld [vmem:[%s1 + $0x188] sm:$0xff]
  %v762 = vld [vmem:[%s1 + $0x190] sm:$0xff]
  %v763 = vld [vmem:[%s1 + $0x198] sm:$0xff]
  %v764 = vld [vmem:[%s1 + $0x1a0] sm:$0xff]
  %v765 = vld [vmem:[%s1 + $0x1a8] sm:$0xff]
  %v766 = vld [vmem:[%s1 + $0x1b0] sm:$0xff]
  %v767 = vld [vmem:[%s1 + $0x1b8] sm:$0xff]
  %v768 = vld [vmem:[%s1 + $0x1c0] sm:$0xff]
  %v769 = vld [vmem:[%s1 + $0x1c8] sm:$0xff]
  %v770 = vld [vmem:[%s1 + $0x1d0] sm:$0xff]
  %v771 = vld [vmem:[%s1 + $0x1d8] sm:$0xff]
  %v772 = vld [vmem:[%s1 + $0x1e0] sm:$0xff]
  %v773 = vld [vmem:[%s1 + $0x1e8] sm:$0xff]
  %v774 = vld [vmem:[%s1 + $0x1f0] sm:$0xff]
  %v775 = vld [vmem:[%s1 + $0x1f8] sm:$0xff]
  %776 = vmatpush.msra.mxu0 %v772
  %777 = vmatpush.msra.mxu0 %v768
  %778 = vmatpush.msra.mxu0 %v764
  %779 = vmatpush.msra.mxu0 %v760
  %780 = vmatpush.msra.mxu0 %v756
  %781 = vmatpush.msra.mxu0 %v752
  %782 = vmatpush.msra.mxu0 %v748
  %783 = vmatpush.msra.mxu0 %v744
  %784 = vmatpush.msra.mxu0 %v740
  %785 = vmatpush.msra.mxu0 %v736
  %786 = vmatpush.msra.mxu0 %v732
  %787 = vmatpush.msra.mxu0 %v728
  %788 = vmatpush.msra.mxu0 %v724
  %789 = vmatpush.msra.mxu0 %v720
  %790 = vmatpush.msra.mxu0 %v716
  %791 = vmatpush.msra.mxu0 %v712
  %792 = vmatmul.f32.gmra.mxu0 %v707
  %v793 = vpop.f32.mrf.mxu0
  %v794 = vadd.f32 0.0, %v793
  %795 = vdwg.mxu0
  %796 = vmatpush.msra.mxu0 %v773
  %797 = vmatpush.msra.mxu0 %v769
  %798 = vmatpush.msra.mxu0 %v765
  %799 = vmatpush.msra.mxu0 %v761
  %800 = vmatpush.msra.mxu0 %v757
  %801 = vmatpush.msra.mxu0 %v753
  %802 = vmatpush.msra.mxu0 %v749
  %803 = vmatpush.msra.mxu0 %v745
  %804 = vmatpush.msra.mxu0 %v741
  %805 = vmatpush.msra.mxu0 %v737
  %806 = vmatpush.msra.mxu0 %v733
  %807 = vmatpush.msra.mxu0 %v729
  %808 = vmatpush.msra.mxu0 %v725
  %809 = vmatpush.msra.mxu0 %v721
  %810 = vmatpush.msra.mxu0 %v717
  %811 = vmatpush.msra.mxu0 %v713
  %812 = vmatmul.f32.gmra.mxu0 %v707
  %v813 = vpop.f32.mrf.mxu0
  %v814 = vadd.f32 0.0, %v813
  %815 = vdwg.mxu0
  %816 = vmatpush.msra.mxu0 %v774
  %817 = vmatpush.msra.mxu0 %v770
  %818 = vmatpush.msra.mxu0 %v766
  %819 = vmatpush.msra.mxu0 %v762
  %820 = vmatpush.msra.mxu0 %v758
  %821 = vmatpush.msra.mxu0 %v754
  %822 = vmatpush.msra.mxu0 %v750
  %823 = vmatpush.msra.mxu0 %v746
  %824 = vmatpush.msra.mxu0 %v742
  %825 = vmatpush.msra.mxu0 %v738
  %826 = vmatpush.msra.mxu0 %v734
  %827 = vmatpush.msra.mxu0 %v730
  %828 = vmatpush.msra.mxu0 %v726
  %829 = vmatpush.msra.mxu0 %v722
  %830 = vmatpush.msra.mxu0 %v718
  %831 = vmatpush.msra.mxu0 %v714
  %832 = vmatmul.f32.gmra.mxu0 %v707
  %v833 = vpop.f32.mrf.mxu0
  %v834 = vadd.f32 0.0, %v833
  %835 = vdwg.mxu0
  %836 = vmatpush.msra.mxu0 %v775
  %837 = vmatpush.msra.mxu0 %v771
  %838 = vmatpush.msra.mxu0 %v767
  %839 = vmatpush.msra.mxu0 %v763
  %840 = vmatpush.msra.mxu0 %v759
  %841 = vmatpush.msra.mxu0 %v755
  %842 = vmatpush.msra.mxu0 %v751
  %843 = vmatpush.msra.mxu0 %v747
  %844 = vmatpush.msra.mxu0 %v743
  %845 = vmatpush.msra.mxu0 %v739
  %846 = vmatpush.msra.mxu0 %v735
  %847 = vmatpush.msra.mxu0 %v731
  %848 = vmatpush.msra.mxu0 %v727
  %849 = vmatpush.msra.mxu0 %v723
  %850 = vmatpush.msra.mxu0 %v719
  %851 = vmatpush.msra.mxu0 %v715
  %852 = vmatmul.f32.gmra.mxu0 %v707
  %v853 = vpop.f32.mrf.mxu0
  %v854 = vadd.f32 0.0, %v853
  %855 = vdwg.mxu0
  %v860 = vrot.slane %v814, 6
  %v861 = vrot.slane %v834, 4
  %v862 = vrot.slane %v854, 2
  %v863 = vsel %vm171, %v794, %v860
  %v864 = vsel %vm173, %v861, %v862
  %v865 = vsel %vm175, %v863, %v864
  %v867 = vadd.f32 %v711, %v865
  %v868 = vxor.u32 %v867, 2147483648
  %v869 = vmul.f32 %v868, 1.442695
  %v870 = vpow.pop %v869
  %v871 = vadd.f32 %v870, 1.0
  %v872 = vrcp.pop %v871
  %v873 = vmul.f32 %v871, %v872
  %v874 = vsub.f32 1.0, %v873
  %v875 = vmul.f32 %v872, %v874
  %v876 = vadd.f32 %v872, %v875
  %vm877 = vweird.f32 %v871
  %vm878 = vweird.f32 %v872
  %vm879 = vmor %vm877, %vm878
  %v880 = vsel %vm879, %v872, %v876
  %v881 = vand.u32 2147483647, %v871
  %vm882 = vcmp.eq.f32.partialorder %v881, 8.507059e+37
  %v883 = vand.u32 %v871, 2147483648
  %v884 = vor.u32 1.1754944e-38, %v883
  %v885 = vsel %vm882, %v884, %v880
  %v886 = vmul.f32 1.0, %v885
  %v888 = vrot.slane %v867, 2
  %v890 = vxor.u32 %v888, 2147483648
  %v891 = vmul.f32 %v890, 1.442695
  %v892 = vpow.pop %v891
  %v893 = vadd.f32 %v892, 1.0
  %v894 = vrcp.pop %v893
  %v895 = vmul.f32 %v893, %v894
  %v896 = vsub.f32 1.0, %v895
  %v897 = vmul.f32 %v894, %v896
  %v898 = vadd.f32 %v894, %v897
  %vm899 = vweird.f32 %v893
  %vm900 = vweird.f32 %v894
  %vm901 = vmor %vm899, %vm900
  %v902 = vsel %vm901, %v894, %v898
  %v903 = vand.u32 2147483647, %v893
  %vm904 = vcmp.eq.f32.partialorder %v903, 8.507059e+37
  %v905 = vand.u32 %v893, 2147483648
  %v906 = vor.u32 1.1754944e-38, %v905
  %v907 = vsel %vm904, %v906, %v902
  %v908 = vmul.f32 1.0, %v907
  %v909 = vrot.slane %v867, 4
  %v911 = vtanh.pop %v909
  %v912 = vrot.slane %v867, 6
  %v914 = vxor.u32 %v912, 2147483648
  %v915 = vmul.f32 %v914, 1.442695
  %v916 = vpow.pop %v915
  %v917 = vadd.f32 %v916, 1.0
  %v918 = vrcp.pop %v917
  %v919 = vmul.f32 %v917, %v918
  %v920 = vsub.f32 1.0, %v919
  %v921 = vmul.f32 %v918, %v920
  %v922 = vadd.f32 %v918, %v921
  %vm923 = vweird.f32 %v917
  %vm924 = vweird.f32 %v918
  %vm925 = vmor %vm923, %vm924
  %v926 = vsel %vm925, %v918, %v922
  %v927 = vand.u32 2147483647, %v917
  %vm928 = vcmp.eq.f32.partialorder %v927, 8.507059e+37
  %v929 = vand.u32 %v917, 2147483648
  %v930 = vor.u32 1.1754944e-38, %v929
  %v931 = vsel %vm928, %v930, %v926
  %v932 = vmul.f32 1.0, %v931
  %v933 = vmul.f32 %v908, %v705
  %v934 = vmul.f32 %v886, %v911
  %v935 = vadd.f32 %v933, %v934
  %v936 = vtanh.pop %v935
  %v937 = vmul.f32 %v932, %v936
  %s938 = scalar_lea.vmem %s2, 6
  %939 = vst [vmem:[%s938] sm:$0x3] %v937
  %s940 = scalar_lea.vmem %s0, 32
  %v941 = vld [vmem:[%s940] sm:$0xff]
  %v942 = vld [vmem:[%s1] sm:$0xff]
  %v943 = vld [vmem:[%s1 + $0x8] sm:$0xff]
  %v944 = vld [vmem:[%s1 + $0x10] sm:$0xff]
  %v945 = vld [vmem:[%s1 + $0x18] sm:$0xff]
  %v946 = vld [vmem:[%s1 + $0x20] sm:$0xff]
  %v947 = vld [vmem:[%s1 + $0x28] sm:$0xff]
  %v948 = vld [vmem:[%s1 + $0x30] sm:$0xff]
  %v949 = vld [vmem:[%s1 + $0x38] sm:$0xff]
  %v950 = vld [vmem:[%s1 + $0x40] sm:$0xff]
  %v951 = vld [vmem:[%s1 + $0x48] sm:$0xff]
  %v952 = vld [vmem:[%s1 + $0x50] sm:$0xff]
  %v953 = vld [vmem:[%s1 + $0x58] sm:$0xff]
  %v954 = vld [vmem:[%s1 + $0x60] sm:$0xff]
  %v955 = vld [vmem:[%s1 + $0x68] sm:$0xff]
  %v956 = vld [vmem:[%s1 + $0x70] sm:$0xff]
  %v957 = vld [vmem:[%s1 + $0x78] sm:$0xff]
  %v958 = vld [vmem:[%s1 + $0x80] sm:$0xff]
  %v959 = vld [vmem:[%s1 + $0x88] sm:$0xff]
  %v960 = vld [vmem:[%s1 + $0x90] sm:$0xff]
  %v961 = vld [vmem:[%s1 + $0x98] sm:$0xff]
  %v962 = vld [vmem:[%s1 + $0xa0] sm:$0xff]
  %v963 = vld [vmem:[%s1 + $0xa8] sm:$0xff]
  %v964 = vld [vmem:[%s1 + $0xb0] sm:$0xff]
  %v965 = vld [vmem:[%s1 + $0xb8] sm:$0xff]
  %v966 = vld [vmem:[%s1 + $0xc0] sm:$0xff]
  %v967 = vld [vmem:[%s1 + $0xc8] sm:$0xff]
  %v968 = vld [vmem:[%s1 + $0xd0] sm:$0xff]
  %v969 = vld [vmem:[%s1 + $0xd8] sm:$0xff]
  %v970 = vld [vmem:[%s1 + $0xe0] sm:$0xff]
  %v971 = vld [vmem:[%s1 + $0xe8] sm:$0xff]
  %v972 = vld [vmem:[%s1 + $0xf0] sm:$0xff]
  %v973 = vld [vmem:[%s1 + $0xf8] sm:$0xff]
  %v974 = vld [vmem:[%s1 + $0x100] sm:$0xff]
  %v975 = vld [vmem:[%s1 + $0x108] sm:$0xff]
  %v976 = vld [vmem:[%s1 + $0x110] sm:$0xff]
  %v977 = vld [vmem:[%s1 + $0x118] sm:$0xff]
  %v978 = vld [vmem:[%s1 + $0x120] sm:$0xff]
  %v979 = vld [vmem:[%s1 + $0x128] sm:$0xff]
  %v980 = vld [vmem:[%s1 + $0x130] sm:$0xff]
  %v981 = vld [vmem:[%s1 + $0x138] sm:$0xff]
  %v982 = vld [vmem:[%s1 + $0x140] sm:$0xff]
  %v983 = vld [vmem:[%s1 + $0x148] sm:$0xff]
  %v984 = vld [vmem:[%s1 + $0x150] sm:$0xff]
  %v985 = vld [vmem:[%s1 + $0x158] sm:$0xff]
  %v986 = vld [vmem:[%s1 + $0x160] sm:$0xff]
  %v987 = vld [vmem:[%s1 + $0x168] sm:$0xff]
  %v988 = vld [vmem:[%s1 + $0x170] sm:$0xff]
  %v989 = vld [vmem:[%s1 + $0x178] sm:$0xff]
  %v990 = vld [vmem:[%s1 + $0x180] sm:$0xff]
  %v991 = vld [vmem:[%s1 + $0x188] sm:$0xff]
  %v992 = vld [vmem:[%s1 + $0x190] sm:$0xff]
  %v993 = vld [vmem:[%s1 + $0x198] sm:$0xff]
  %v994 = vld [vmem:[%s1 + $0x1a0] sm:$0xff]
  %v995 = vld [vmem:[%s1 + $0x1a8] sm:$0xff]
  %v996 = vld [vmem:[%s1 + $0x1b0] sm:$0xff]
  %v997 = vld [vmem:[%s1 + $0x1b8] sm:$0xff]
  %v998 = vld [vmem:[%s1 + $0x1c0] sm:$0xff]
  %v999 = vld [vmem:[%s1 + $0x1c8] sm:$0xff]
  %v1000 = vld [vmem:[%s1 + $0x1d0] sm:$0xff]
  %v1001 = vld [vmem:[%s1 + $0x1d8] sm:$0xff]
  %v1002 = vld [vmem:[%s1 + $0x1e0] sm:$0xff]
  %v1003 = vld [vmem:[%s1 + $0x1e8] sm:$0xff]
  %v1004 = vld [vmem:[%s1 + $0x1f0] sm:$0xff]
  %v1005 = vld [vmem:[%s1 + $0x1f8] sm:$0xff]
  %1006 = vmatpush.msra.mxu0 %v1002
  %1007 = vmatpush.msra.mxu0 %v998
  %1008 = vmatpush.msra.mxu0 %v994
  %1009 = vmatpush.msra.mxu0 %v990
  %1010 = vmatpush.msra.mxu0 %v986
  %1011 = vmatpush.msra.mxu0 %v982
  %1012 = vmatpush.msra.mxu0 %v978
  %1013 = vmatpush.msra.mxu0 %v974
  %1014 = vmatpush.msra.mxu0 %v970
  %1015 = vmatpush.msra.mxu0 %v966
  %1016 = vmatpush.msra.mxu0 %v962
  %1017 = vmatpush.msra.mxu0 %v958
  %1018 = vmatpush.msra.mxu0 %v954
  %1019 = vmatpush.msra.mxu0 %v950
  %1020 = vmatpush.msra.mxu0 %v946
  %1021 = vmatpush.msra.mxu0 %v942
  %1022 = vmatmul.f32.gmra.mxu0 %v937
  %v1023 = vpop.f32.mrf.mxu0
  %v1024 = vadd.f32 0.0, %v1023
  %1025 = vdwg.mxu0
  %1026 = vmatpush.msra.mxu0 %v1003
  %1027 = vmatpush.msra.mxu0 %v999
  %1028 = vmatpush.msra.mxu0 %v995
  %1029 = vmatpush.msra.mxu0 %v991
  %1030 = vmatpush.msra.mxu0 %v987
  %1031 = vmatpush.msra.mxu0 %v983
  %1032 = vmatpush.msra.mxu0 %v979
  %1033 = vmatpush.msra.mxu0 %v975
  %1034 = vmatpush.msra.mxu0 %v971
  %1035 = vmatpush.msra.mxu0 %v967
  %1036 = vmatpush.msra.mxu0 %v963
  %1037 = vmatpush.msra.mxu0 %v959
  %1038 = vmatpush.msra.mxu0 %v955
  %1039 = vmatpush.msra.mxu0 %v951
  %1040 = vmatpush.msra.mxu0 %v947
  %1041 = vmatpush.msra.mxu0 %v943
  %1042 = vmatmul.f32.gmra.mxu0 %v937
  %v1043 = vpop.f32.mrf.mxu0
  %v1044 = vadd.f32 0.0, %v1043
  %1045 = vdwg.mxu0
  %1046 = vmatpush.msra.mxu0 %v1004
  %1047 = vmatpush.msra.mxu0 %v1000
  %1048 = vmatpush.msra.mxu0 %v996
  %1049 = vmatpush.msra.mxu0 %v992
  %1050 = vmatpush.msra.mxu0 %v988
  %1051 = vmatpush.msra.mxu0 %v984
  %1052 = vmatpush.msra.mxu0 %v980
  %1053 = vmatpush.msra.mxu0 %v976
  %1054 = vmatpush.msra.mxu0 %v972
  %1055 = vmatpush.msra.mxu0 %v968
  %1056 = vmatpush.msra.mxu0 %v964
  %1057 = vmatpush.msra.mxu0 %v960
  %1058 = vmatpush.msra.mxu0 %v956
  %1059 = vmatpush.msra.mxu0 %v952
  %1060 = vmatpush.msra.mxu0 %v948
  %1061 = vmatpush.msra.mxu0 %v944
  %1062 = vmatmul.f32.gmra.mxu0 %v937
  %v1063 = vpop.f32.mrf.mxu0
  %v1064 = vadd.f32 0.0, %v1063
  %1065 = vdwg.mxu0
  %1066 = vmatpush.msra.mxu0 %v1005
  %1067 = vmatpush.msra.mxu0 %v1001
  %1068 = vmatpush.msra.mxu0 %v997
  %1069 = vmatpush.msra.mxu0 %v993
  %1070 = vmatpush.msra.mxu0 %v989
  %1071 = vmatpush.msra.mxu0 %v985
  %1072 = vmatpush.msra.mxu0 %v981
  %1073 = vmatpush.msra.mxu0 %v977
  %1074 = vmatpush.msra.mxu0 %v973
  %1075 = vmatpush.msra.mxu0 %v969
  %1076 = vmatpush.msra.mxu0 %v965
  %1077 = vmatpush.msra.mxu0 %v961
  %1078 = vmatpush.msra.mxu0 %v957
  %1079 = vmatpush.msra.mxu0 %v953
  %1080 = vmatpush.msra.mxu0 %v949
  %1081 = vmatpush.msra.mxu0 %v945
  %1082 = vmatmul.f32.gmra.mxu0 %v937
  %v1083 = vpop.f32.mrf.mxu0
  %v1084 = vadd.f32 0.0, %v1083
  %1085 = vdwg.mxu0
  %v1090 = vrot.slane %v1044, 6
  %v1091 = vrot.slane %v1064, 4
  %v1092 = vrot.slane %v1084, 2
  %v1093 = vsel %vm171, %v1024, %v1090
  %v1094 = vsel %vm173, %v1091, %v1092
  %v1095 = vsel %vm175, %v1093, %v1094
  %v1097 = vadd.f32 %v941, %v1095
  %v1098 = vxor.u32 %v1097, 2147483648
  %v1099 = vmul.f32 %v1098, 1.442695
  %v1100 = vpow.pop %v1099
  %v1101 = vadd.f32 %v1100, 1.0
  %v1102 = vrcp.pop %v1101
  %v1103 = vmul.f32 %v1101, %v1102
  %v1104 = vsub.f32 1.0, %v1103
  %v1105 = vmul.f32 %v1102, %v1104
  %v1106 = vadd.f32 %v1102, %v1105
  %vm1107 = vweird.f32 %v1101
  %vm1108 = vweird.f32 %v1102
  %vm1109 = vmor %vm1107, %vm1108
  %v1110 = vsel %vm1109, %v1102, %v1106
  %v1111 = vand.u32 2147483647, %v1101
  %vm1112 = vcmp.eq.f32.partialorder %v1111, 8.507059e+37
  %v1113 = vand.u32 %v1101, 2147483648
  %v1114 = vor.u32 1.1754944e-38, %v1113
  %v1115 = vsel %vm1112, %v1114, %v1110
  %v1116 = vmul.f32 1.0, %v1115
  %v1118 = vrot.slane %v1097, 2
  %v1120 = vxor.u32 %v1118, 2147483648
  %v1121 = vmul.f32 %v1120, 1.442695
  %v1122 = vpow.pop %v1121
  %v1123 = vadd.f32 %v1122, 1.0
  %v1124 = vrcp.pop %v1123
  %v1125 = vmul.f32 %v1123, %v1124
  %v1126 = vsub.f32 1.0, %v1125
  %v1127 = vmul.f32 %v1124, %v1126
  %v1128 = vadd.f32 %v1124, %v1127
  %vm1129 = vweird.f32 %v1123
  %vm1130 = vweird.f32 %v1124
  %vm1131 = vmor %vm1129, %vm1130
  %v1132 = vsel %vm1131, %v1124, %v1128
  %v1133 = vand.u32 2147483647, %v1123
  %vm1134 = vcmp.eq.f32.partialorder %v1133, 8.507059e+37
  %v1135 = vand.u32 %v1123, 2147483648
  %v1136 = vor.u32 1.1754944e-38, %v1135
  %v1137 = vsel %vm1134, %v1136, %v1132
  %v1138 = vmul.f32 1.0, %v1137
  %v1139 = vrot.slane %v1097, 4
  %v1141 = vtanh.pop %v1139
  %v1142 = vrot.slane %v1097, 6
  %v1144 = vxor.u32 %v1142, 2147483648
  %v1145 = vmul.f32 %v1144, 1.442695
  %v1146 = vpow.pop %v1145
  %v1147 = vadd.f32 %v1146, 1.0
  %v1148 = vrcp.pop %v1147
  %v1149 = vmul.f32 %v1147, %v1148
  %v1150 = vsub.f32 1.0, %v1149
  %v1151 = vmul.f32 %v1148, %v1150
  %v1152 = vadd.f32 %v1148, %v1151
  %vm1153 = vweird.f32 %v1147
  %vm1154 = vweird.f32 %v1148
  %vm1155 = vmor %vm1153, %vm1154
  %v1156 = vsel %vm1155, %v1148, %v1152
  %v1157 = vand.u32 2147483647, %v1147
  %vm1158 = vcmp.eq.f32.partialorder %v1157, 8.507059e+37
  %v1159 = vand.u32 %v1147, 2147483648
  %v1160 = vor.u32 1.1754944e-38, %v1159
  %v1161 = vsel %vm1158, %v1160, %v1156
  %v1162 = vmul.f32 1.0, %v1161
  %v1163 = vmul.f32 %v1138, %v935
  %v1164 = vmul.f32 %v1116, %v1141
  %v1165 = vadd.f32 %v1163, %v1164
  %v1166 = vtanh.pop %v1165
  %v1167 = vmul.f32 %v1162, %v1166
  %s1168 = scalar_lea.vmem %s2, 8
  %1169 = vst [vmem:[%s1168] sm:$0x3] %v1167
  %s1170 = scalar_lea.vmem %s0, 40
  %v1171 = vld [vmem:[%s1170] sm:$0xff]
  %v1172 = vld [vmem:[%s1] sm:$0xff]
  %v1173 = vld [vmem:[%s1 + $0x8] sm:$0xff]
  %v1174 = vld [vmem:[%s1 + $0x10] sm:$0xff]
  %v1175 = vld [vmem:[%s1 + $0x18] sm:$0xff]
  %v1176 = vld [vmem:[%s1 + $0x20] sm:$0xff]
  %v1177 = vld [vmem:[%s1 + $0x28] sm:$0xff]
  %v1178 = vld [vmem:[%s1 + $0x30] sm:$0xff]
  %v1179 = vld [vmem:[%s1 + $0x38] sm:$0xff]
  %v1180 = vld [vmem:[%s1 + $0x40] sm:$0xff]
  %v1181 = vld [vmem:[%s1 + $0x48] sm:$0xff]
  %v1182 = vld [vmem:[%s1 + $0x50] sm:$0xff]
  %v1183 = vld [vmem:[%s1 + $0x58] sm:$0xff]
  %v1184 = vld [vmem:[%s1 + $0x60] sm:$0xff]
  %v1185 = vld [vmem:[%s1 + $0x68] sm:$0xff]
  %v1186 = vld [vmem:[%s1 + $0x70] sm:$0xff]
  %v1187 = vld [vmem:[%s1 + $0x78] sm:$0xff]
  %v1188 = vld [vmem:[%s1 + $0x80] sm:$0xff]
  %v1189 = vld [vmem:[%s1 + $0x88] sm:$0xff]
  %v1190 = vld [vmem:[%s1 + $0x90] sm:$0xff]
  %v1191 = vld [vmem:[%s1 + $0x98] sm:$0xff]
  %v1192 = vld [vmem:[%s1 + $0xa0] sm:$0xff]
  %v1193 = vld [vmem:[%s1 + $0xa8] sm:$0xff]
  %v1194 = vld [vmem:[%s1 + $0xb0] sm:$0xff]
  %v1195 = vld [vmem:[%s1 + $0xb8] sm:$0xff]
  %v1196 = vld [vmem:[%s1 + $0xc0] sm:$0xff]
  %v1197 = vld [vmem:[%s1 + $0xc8] sm:$0xff]
  %v1198 = vld [vmem:[%s1 + $0xd0] sm:$0xff]
  %v1199 = vld [vmem:[%s1 + $0xd8] sm:$0xff]
  %v1200 = vld [vmem:[%s1 + $0xe0] sm:$0xff]
  %v1201 = vld [vmem:[%s1 + $0xe8] sm:$0xff]
  %v1202 = vld [vmem:[%s1 + $0xf0] sm:$0xff]
  %v1203 = vld [vmem:[%s1 + $0xf8] sm:$0xff]
  %v1204 = vld [vmem:[%s1 + $0x100] sm:$0xff]
  %v1205 = vld [vmem:[%s1 + $0x108] sm:$0xff]
  %v1206 = vld [vmem:[%s1 + $0x110] sm:$0xff]
  %v1207 = vld [vmem:[%s1 + $0x118] sm:$0xff]
  %v1208 = vld [vmem:[%s1 + $0x120] sm:$0xff]
  %v1209 = vld [vmem:[%s1 + $0x128] sm:$0xff]
  %v1210 = vld [vmem:[%s1 + $0x130] sm:$0xff]
  %v1211 = vld [vmem:[%s1 + $0x138] sm:$0xff]
  %v1212 = vld [vmem:[%s1 + $0x140] sm:$0xff]
  %v1213 = vld [vmem:[%s1 + $0x148] sm:$0xff]
  %v1214 = vld [vmem:[%s1 + $0x150] sm:$0xff]
  %v1215 = vld [vmem:[%s1 + $0x158] sm:$0xff]
  %v1216 = vld [vmem:[%s1 + $0x160] sm:$0xff]
  %v1217 = vld [vmem:[%s1 + $0x168] sm:$0xff]
  %v1218 = vld [vmem:[%s1 + $0x170] sm:$0xff]
  %v1219 = vld [vmem:[%s1 + $0x178] sm:$0xff]
  %v1220 = vld [vmem:[%s1 + $0x180] sm:$0xff]
  %v1221 = vld [vmem:[%s1 + $0x188] sm:$0xff]
  %v1222 = vld [vmem:[%s1 + $0x190] sm:$0xff]
  %v1223 = vld [vmem:[%s1 + $0x198] sm:$0xff]
  %v1224 = vld [vmem:[%s1 + $0x1a0] sm:$0xff]
  %v1225 = vld [vmem:[%s1 + $0x1a8] sm:$0xff]
  %v1226 = vld [vmem:[%s1 + $0x1b0] sm:$0xff]
  %v1227 = vld [vmem:[%s1 + $0x1b8] sm:$0xff]
  %v1228 = vld [vmem:[%s1 + $0x1c0] sm:$0xff]
  %v1229 = vld [vmem:[%s1 + $0x1c8] sm:$0xff]
  %v1230 = vld [vmem:[%s1 + $0x1d0] sm:$0xff]
  %v1231 = vld [vmem:[%s1 + $0x1d8] sm:$0xff]
  %v1232 = vld [vmem:[%s1 + $0x1e0] sm:$0xff]
  %v1233 = vld [vmem:[%s1 + $0x1e8] sm:$0xff]
  %v1234 = vld [vmem:[%s1 + $0x1f0] sm:$0xff]
  %v1235 = vld [vmem:[%s1 + $0x1f8] sm:$0xff]
  %1236 = vmatpush.msra.mxu0 %v1232
  %1237 = vmatpush.msra.mxu0 %v1228
  %1238 = vmatpush.msra.mxu0 %v1224
  %1239 = vmatpush.msra.mxu0 %v1220
  %1240 = vmatpush.msra.mxu0 %v1216
  %1241 = vmatpush.msra.mxu0 %v1212
  %1242 = vmatpush.msra.mxu0 %v1208
  %1243 = vmatpush.msra.mxu0 %v1204
  %1244 = vmatpush.msra.mxu0 %v1200
  %1245 = vmatpush.msra.mxu0 %v1196
  %1246 = vmatpush.msra.mxu0 %v1192
  %1247 = vmatpush.msra.mxu0 %v1188
  %1248 = vmatpush.msra.mxu0 %v1184
  %1249 = vmatpush.msra.mxu0 %v1180
  %1250 = vmatpush.msra.mxu0 %v1176
  %1251 = vmatpush.msra.mxu0 %v1172
  %1252 = vmatmul.f32.gmra.mxu0 %v1167
  %v1253 = vpop.f32.mrf.mxu0
  %v1254 = vadd.f32 0.0, %v1253
  %1255 = vdwg.mxu0
  %1256 = vmatpush.msra.mxu0 %v1233
  %1257 = vmatpush.msra.mxu0 %v1229
  %1258 = vmatpush.msra.mxu0 %v1225
  %1259 = vmatpush.msra.mxu0 %v1221
  %1260 = vmatpush.msra.mxu0 %v1217
  %1261 = vmatpush.msra.mxu0 %v1213
  %1262 = vmatpush.msra.mxu0 %v1209
  %1263 = vmatpush.msra.mxu0 %v1205
  %1264 = vmatpush.msra.mxu0 %v1201
  %1265 = vmatpush.msra.mxu0 %v1197
  %1266 = vmatpush.msra.mxu0 %v1193
  %1267 = vmatpush.msra.mxu0 %v1189
  %1268 = vmatpush.msra.mxu0 %v1185
  %1269 = vmatpush.msra.mxu0 %v1181
  %1270 = vmatpush.msra.mxu0 %v1177
  %1271 = vmatpush.msra.mxu0 %v1173
  %1272 = vmatmul.f32.gmra.mxu0 %v1167
  %v1273 = vpop.f32.mrf.mxu0
  %v1274 = vadd.f32 0.0, %v1273
  %1275 = vdwg.mxu0
  %1276 = vmatpush.msra.mxu0 %v1234
  %1277 = vmatpush.msra.mxu0 %v1230
  %1278 = vmatpush.msra.mxu0 %v1226
  %1279 = vmatpush.msra.mxu0 %v1222
  %1280 = vmatpush.msra.mxu0 %v1218
  %1281 = vmatpush.msra.mxu0 %v1214
  %1282 = vmatpush.msra.mxu0 %v1210
  %1283 = vmatpush.msra.mxu0 %v1206
  %1284 = vmatpush.msra.mxu0 %v1202
  %1285 = vmatpush.msra.mxu0 %v1198
  %1286 = vmatpush.msra.mxu0 %v1194
  %1287 = vmatpush.msra.mxu0 %v1190
  %1288 = vmatpush.msra.mxu0 %v1186
  %1289 = vmatpush.msra.mxu0 %v1182
  %1290 = vmatpush.msra.mxu0 %v1178
  %1291 = vmatpush.msra.mxu0 %v1174
  %1292 = vmatmul.f32.gmra.mxu0 %v1167
  %v1293 = vpop.f32.mrf.mxu0
  %v1294 = vadd.f32 0.0, %v1293
  %1295 = vdwg.mxu0
  %1296 = vmatpush.msra.mxu0 %v1235
  %1297 = vmatpush.msra.mxu0 %v1231
  %1298 = vmatpush.msra.mxu0 %v1227
  %1299 = vmatpush.msra.mxu0 %v1223
  %1300 = vmatpush.msra.mxu0 %v1219
  %1301 = vmatpush.msra.mxu0 %v1215
  %1302 = vmatpush.msra.mxu0 %v1211
  %1303 = vmatpush.msra.mxu0 %v1207
  %1304 = vmatpush.msra.mxu0 %v1203
  %1305 = vmatpush.msra.mxu0 %v1199
  %1306 = vmatpush.msra.mxu0 %v1195
  %1307 = vmatpush.msra.mxu0 %v1191
  %1308 = vmatpush.msra.mxu0 %v1187
  %1309 = vmatpush.msra.mxu0 %v1183
  %1310 = vmatpush.msra.mxu0 %v1179
  %1311 = vmatpush.msra.mxu0 %v1175
  %1312 = vmatmul.f32.gmra.mxu0 %v1167
  %v1313 = vpop.f32.mrf.mxu0
  %v1314 = vadd.f32 0.0, %v1313
  %1315 = vdwg.mxu0
  %v1320 = vrot.slane %v1274, 6
  %v1321 = vrot.slane %v1294, 4
  %v1322 = vrot.slane %v1314, 2
  %v1323 = vsel %vm171, %v1254, %v1320
  %v1324 = vsel %vm173, %v1321, %v1322
  %v1325 = vsel %vm175, %v1323, %v1324
  %v1327 = vadd.f32 %v1171, %v1325
  %v1328 = vxor.u32 %v1327, 2147483648
  %v1329 = vmul.f32 %v1328, 1.442695
  %v1330 = vpow.pop %v1329
  %v1331 = vadd.f32 %v1330, 1.0
  %v1332 = vrcp.pop %v1331
  %v1333 = vmul.f32 %v1331, %v1332
  %v1334 = vsub.f32 1.0, %v1333
  %v1335 = vmul.f32 %v1332, %v1334
  %v1336 = vadd.f32 %v1332, %v1335
  %vm1337 = vweird.f32 %v1331
  %vm1338 = vweird.f32 %v1332
  %vm1339 = vmor %vm1337, %vm1338
  %v1340 = vsel %vm1339, %v1332, %v1336
  %v1341 = vand.u32 2147483647, %v1331
  %vm1342 = vcmp.eq.f32.partialorder %v1341, 8.507059e+37
  %v1343 = vand.u32 %v1331, 2147483648
  %v1344 = vor.u32 1.1754944e-38, %v1343
  %v1345 = vsel %vm1342, %v1344, %v1340
  %v1346 = vmul.f32 1.0, %v1345
  %v1348 = vrot.slane %v1327, 2
  %v1350 = vxor.u32 %v1348, 2147483648
  %v1351 = vmul.f32 %v1350, 1.442695
  %v1352 = vpow.pop %v1351
  %v1353 = vadd.f32 %v1352, 1.0
  %v1354 = vrcp.pop %v1353
  %v1355 = vmul.f32 %v1353, %v1354
  %v1356 = vsub.f32 1.0, %v1355
  %v1357 = vmul.f32 %v1354, %v1356
  %v1358 = vadd.f32 %v1354, %v1357
  %vm1359 = vweird.f32 %v1353
  %vm1360 = vweird.f32 %v1354
  %vm1361 = vmor %vm1359, %vm1360
  %v1362 = vsel %vm1361, %v1354, %v1358
  %v1363 = vand.u32 2147483647, %v1353
  %vm1364 = vcmp.eq.f32.partialorder %v1363, 8.507059e+37
  %v1365 = vand.u32 %v1353, 2147483648
  %v1366 = vor.u32 1.1754944e-38, %v1365
  %v1367 = vsel %vm1364, %v1366, %v1362
  %v1368 = vmul.f32 1.0, %v1367
  %v1369 = vrot.slane %v1327, 4
  %v1371 = vtanh.pop %v1369
  %v1372 = vrot.slane %v1327, 6
  %v1374 = vxor.u32 %v1372, 2147483648
  %v1375 = vmul.f32 %v1374, 1.442695
  %v1376 = vpow.pop %v1375
  %v1377 = vadd.f32 %v1376, 1.0
  %v1378 = vrcp.pop %v1377
  %v1379 = vmul.f32 %v1377, %v1378
  %v1380 = vsub.f32 1.0, %v1379
  %v1381 = vmul.f32 %v1378, %v1380
  %v1382 = vadd.f32 %v1378, %v1381
  %vm1383 = vweird.f32 %v1377
  %vm1384 = vweird.f32 %v1378
  %vm1385 = vmor %vm1383, %vm1384
  %v1386 = vsel %vm1385, %v1378, %v1382
  %v1387 = vand.u32 2147483647, %v1377
  %vm1388 = vcmp.eq.f32.partialorder %v1387, 8.507059e+37
  %v1389 = vand.u32 %v1377, 2147483648
  %v1390 = vor.u32 1.1754944e-38, %v1389
  %v1391 = vsel %vm1388, %v1390, %v1386
  %v1392 = vmul.f32 1.0, %v1391
  %v1393 = vmul.f32 %v1368, %v1165
  %v1394 = vmul.f32 %v1346, %v1371
  %v1395 = vadd.f32 %v1393, %v1394
  %v1396 = vtanh.pop %v1395
  %v1397 = vmul.f32 %v1392, %v1396
  %s1398 = scalar_lea.vmem %s2, 10
  %1399 = vst [vmem:[%s1398] sm:$0x3] %v1397
  %s1400 = scalar_lea.vmem %s0, 48
  %v1401 = vld [vmem:[%s1400] sm:$0xff]
  %v1402 = vld [vmem:[%s1] sm:$0xff]
  %v1403 = vld [vmem:[%s1 + $0x8] sm:$0xff]
  %v1404 = vld [vmem:[%s1 + $0x10] sm:$0xff]
  %v1405 = vld [vmem:[%s1 + $0x18] sm:$0xff]
  %v1406 = vld [vmem:[%s1 + $0x20] sm:$0xff]
  %v1407 = vld [vmem:[%s1 + $0x28] sm:$0xff]
  %v1408 = vld [vmem:[%s1 + $0x30] sm:$0xff]
  %v1409 = vld [vmem:[%s1 + $0x38] sm:$0xff]
  %v1410 = vld [vmem:[%s1 + $0x40] sm:$0xff]
  %v1411 = vld [vmem:[%s1 + $0x48] sm:$0xff]
  %v1412 = vld [vmem:[%s1 + $0x50] sm:$0xff]
  %v1413 = vld [vmem:[%s1 + $0x58] sm:$0xff]
  %v1414 = vld [vmem:[%s1 + $0x60] sm:$0xff]
  %v1415 = vld [vmem:[%s1 + $0x68] sm:$0xff]
  %v1416 = vld [vmem:[%s1 + $0x70] sm:$0xff]
  %v1417 = vld [vmem:[%s1 + $0x78] sm:$0xff]
  %v1418 = vld [vmem:[%s1 + $0x80] sm:$0xff]
  %v1419 = vld [vmem:[%s1 + $0x88] sm:$0xff]
  %v1420 = vld [vmem:[%s1 + $0x90] sm:$0xff]
  %v1421 = vld [vmem:[%s1 + $0x98] sm:$0xff]
  %v1422 = vld [vmem:[%s1 + $0xa0] sm:$0xff]
  %v1423 = vld [vmem:[%s1 + $0xa8] sm:$0xff]
  %v1424 = vld [vmem:[%s1 + $0xb0] sm:$0xff]
  %v1425 = vld [vmem:[%s1 + $0xb8] sm:$0xff]
  %v1426 = vld [vmem:[%s1 + $0xc0] sm:$0xff]
  %v1427 = vld [vmem:[%s1 + $0xc8] sm:$0xff]
  %v1428 = vld [vmem:[%s1 + $0xd0] sm:$0xff]
  %v1429 = vld [vmem:[%s1 + $0xd8] sm:$0xff]
  %v1430 = vld [vmem:[%s1 + $0xe0] sm:$0xff]
  %v1431 = vld [vmem:[%s1 + $0xe8] sm:$0xff]
  %v1432 = vld [vmem:[%s1 + $0xf0] sm:$0xff]
  %v1433 = vld [vmem:[%s1 + $0xf8] sm:$0xff]
  %v1434 = vld [vmem:[%s1 + $0x100] sm:$0xff]
  %v1435 = vld [vmem:[%s1 + $0x108] sm:$0xff]
  %v1436 = vld [vmem:[%s1 + $0x110] sm:$0xff]
  %v1437 = vld [vmem:[%s1 + $0x118] sm:$0xff]
  %v1438 = vld [vmem:[%s1 + $0x120] sm:$0xff]
  %v1439 = vld [vmem:[%s1 + $0x128] sm:$0xff]
  %v1440 = vld [vmem:[%s1 + $0x130] sm:$0xff]
  %v1441 = vld [vmem:[%s1 + $0x138] sm:$0xff]
  %v1442 = vld [vmem:[%s1 + $0x140] sm:$0xff]
  %v1443 = vld [vmem:[%s1 + $0x148] sm:$0xff]
  %v1444 = vld [vmem:[%s1 + $0x150] sm:$0xff]
  %v1445 = vld [vmem:[%s1 + $0x158] sm:$0xff]
  %v1446 = vld [vmem:[%s1 + $0x160] sm:$0xff]
  %v1447 = vld [vmem:[%s1 + $0x168] sm:$0xff]
  %v1448 = vld [vmem:[%s1 + $0x170] sm:$0xff]
  %v1449 = vld [vmem:[%s1 + $0x178] sm:$0xff]
  %v1450 = vld [vmem:[%s1 + $0x180] sm:$0xff]
  %v1451 = vld [vmem:[%s1 + $0x188] sm:$0xff]
  %v1452 = vld [vmem:[%s1 + $0x190] sm:$0xff]
  %v1453 = vld [vmem:[%s1 + $0x198] sm:$0xff]
  %v1454 = vld [vmem:[%s1 + $0x1a0] sm:$0xff]
  %v1455 = vld [vmem:[%s1 + $0x1a8] sm:$0xff]
  %v1456 = vld [vmem:[%s1 + $0x1b0] sm:$0xff]
  %v1457 = vld [vmem:[%s1 + $0x1b8] sm:$0xff]
  %v1458 = vld [vmem:[%s1 + $0x1c0] sm:$0xff]
  %v1459 = vld [vmem:[%s1 + $0x1c8] sm:$0xff]
  %v1460 = vld [vmem:[%s1 + $0x1d0] sm:$0xff]
  %v1461 = vld [vmem:[%s1 + $0x1d8] sm:$0xff]
  %v1462 = vld [vmem:[%s1 + $0x1e0] sm:$0xff]
  %v1463 = vld [vmem:[%s1 + $0x1e8] sm:$0xff]
  %v1464 = vld [vmem:[%s1 + $0x1f0] sm:$0xff]
  %v1465 = vld [vmem:[%s1 + $0x1f8] sm:$0xff]
  %1466 = vmatpush.msra.mxu0 %v1462
  %1467 = vmatpush.msra.mxu0 %v1458
  %1468 = vmatpush.msra.mxu0 %v1454
  %1469 = vmatpush.msra.mxu0 %v1450
  %1470 = vmatpush.msra.mxu0 %v1446
  %1471 = vmatpush.msra.mxu0 %v1442
  %1472 = vmatpush.msra.mxu0 %v1438
  %1473 = vmatpush.msra.mxu0 %v1434
  %1474 = vmatpush.msra.mxu0 %v1430
  %1475 = vmatpush.msra.mxu0 %v1426
  %1476 = vmatpush.msra.mxu0 %v1422
  %1477 = vmatpush.msra.mxu0 %v1418
  %1478 = vmatpush.msra.mxu0 %v1414
  %1479 = vmatpush.msra.mxu0 %v1410
  %1480 = vmatpush.msra.mxu0 %v1406
  %1481 = vmatpush.msra.mxu0 %v1402
  %1482 = vmatmul.f32.gmra.mxu0 %v1397
  %v1483 = vpop.f32.mrf.mxu0
  %v1484 = vadd.f32 0.0, %v1483
  %1485 = vdwg.mxu0
  %1486 = vmatpush.msra.mxu0 %v1463
  %1487 = vmatpush.msra.mxu0 %v1459
  %1488 = vmatpush.msra.mxu0 %v1455
  %1489 = vmatpush.msra.mxu0 %v1451
  %1490 = vmatpush.msra.mxu0 %v1447
  %1491 = vmatpush.msra.mxu0 %v1443
  %1492 = vmatpush.msra.mxu0 %v1439
  %1493 = vmatpush.msra.mxu0 %v1435
  %1494 = vmatpush.msra.mxu0 %v1431
  %1495 = vmatpush.msra.mxu0 %v1427
  %1496 = vmatpush.msra.mxu0 %v1423
  %1497 = vmatpush.msra.mxu0 %v1419
  %1498 = vmatpush.msra.mxu0 %v1415
  %1499 = vmatpush.msra.mxu0 %v1411
  %1500 = vmatpush.msra.mxu0 %v1407
  %1501 = vmatpush.msra.mxu0 %v1403
  %1502 = vmatmul.f32.gmra.mxu0 %v1397
  %v1503 = vpop.f32.mrf.mxu0
  %v1504 = vadd.f32 0.0, %v1503
  %1505 = vdwg.mxu0
  %1506 = vmatpush.msra.mxu0 %v1464
  %1507 = vmatpush.msra.mxu0 %v1460
  %1508 = vmatpush.msra.mxu0 %v1456
  %1509 = vmatpush.msra.mxu0 %v1452
  %1510 = vmatpush.msra.mxu0 %v1448
  %1511 = vmatpush.msra.mxu0 %v1444
  %1512 = vmatpush.msra.mxu0 %v1440
  %1513 = vmatpush.msra.mxu0 %v1436
  %1514 = vmatpush.msra.mxu0 %v1432
  %1515 = vmatpush.msra.mxu0 %v1428
  %1516 = vmatpush.msra.mxu0 %v1424
  %1517 = vmatpush.msra.mxu0 %v1420
  %1518 = vmatpush.msra.mxu0 %v1416
  %1519 = vmatpush.msra.mxu0 %v1412
  %1520 = vmatpush.msra.mxu0 %v1408
  %1521 = vmatpush.msra.mxu0 %v1404
  %1522 = vmatmul.f32.gmra.mxu0 %v1397
  %v1523 = vpop.f32.mrf.mxu0
  %v1524 = vadd.f32 0.0, %v1523
  %1525 = vdwg.mxu0
  %1526 = vmatpush.msra.mxu0 %v1465
  %1527 = vmatpush.msra.mxu0 %v1461
  %1528 = vmatpush.msra.mxu0 %v1457
  %1529 = vmatpush.msra.mxu0 %v1453
  %1530 = vmatpush.msra.mxu0 %v1449
  %1531 = vmatpush.msra.mxu0 %v1445
  %1532 = vmatpush.msra.mxu0 %v1441
  %1533 = vmatpush.msra.mxu0 %v1437
  %1534 = vmatpush.msra.mxu0 %v1433
  %1535 = vmatpush.msra.mxu0 %v1429
  %1536 = vmatpush.msra.mxu0 %v1425
  %1537 = vmatpush.msra.mxu0 %v1421
  %1538 = vmatpush.msra.mxu0 %v1417
  %1539 = vmatpush.msra.mxu0 %v1413
  %1540 = vmatpush.msra.mxu0 %v1409
  %1541 = vmatpush.msra.mxu0 %v1405
  %1542 = vmatmul.f32.gmra.mxu0 %v1397
  %v1543 = vpop.f32.mrf.mxu0
  %v1544 = vadd.f32 0.0, %v1543
  %1545 = vdwg.mxu0
  %v1550 = vrot.slane %v1504, 6
  %v1551 = vrot.slane %v1524, 4
  %v1552 = vrot.slane %v1544, 2
  %v1553 = vsel %vm171, %v1484, %v1550
  %v1554 = vsel %vm173, %v1551, %v1552
  %v1555 = vsel %vm175, %v1553, %v1554
  %v1557 = vadd.f32 %v1401, %v1555
  %v1558 = vxor.u32 %v1557, 2147483648
  %v1559 = vmul.f32 %v1558, 1.442695
  %v1560 = vpow.pop %v1559
  %v1561 = vadd.f32 %v1560, 1.0
  %v1562 = vrcp.pop %v1561
  %v1563 = vmul.f32 %v1561, %v1562
  %v1564 = vsub.f32 1.0, %v1563
  %v1565 = vmul.f32 %v1562, %v1564
  %v1566 = vadd.f32 %v1562, %v1565
  %vm1567 = vweird.f32 %v1561
  %vm1568 = vweird.f32 %v1562
  %vm1569 = vmor %vm1567, %vm1568
  %v1570 = vsel %vm1569, %v1562, %v1566
  %v1571 = vand.u32 2147483647, %v1561
  %vm1572 = vcmp.eq.f32.partialorder %v1571, 8.507059e+37
  %v1573 = vand.u32 %v1561, 2147483648
  %v1574 = vor.u32 1.1754944e-38, %v1573
  %v1575 = vsel %vm1572, %v1574, %v1570
  %v1576 = vmul.f32 1.0, %v1575
  %v1578 = vrot.slane %v1557, 2
  %v1580 = vxor.u32 %v1578, 2147483648
  %v1581 = vmul.f32 %v1580, 1.442695
  %v1582 = vpow.pop %v1581
  %v1583 = vadd.f32 %v1582, 1.0
  %v1584 = vrcp.pop %v1583
  %v1585 = vmul.f32 %v1583, %v1584
  %v1586 = vsub.f32 1.0, %v1585
  %v1587 = vmul.f32 %v1584, %v1586
  %v1588 = vadd.f32 %v1584, %v1587
  %vm1589 = vweird.f32 %v1583
  %vm1590 = vweird.f32 %v1584
  %vm1591 = vmor %vm1589, %vm1590
  %v1592 = vsel %vm1591, %v1584, %v1588
  %v1593 = vand.u32 2147483647, %v1583
  %vm1594 = vcmp.eq.f32.partialorder %v1593, 8.507059e+37
  %v1595 = vand.u32 %v1583, 2147483648
  %v1596 = vor.u32 1.1754944e-38, %v1595
  %v1597 = vsel %vm1594, %v1596, %v1592
  %v1598 = vmul.f32 1.0, %v1597
  %v1599 = vrot.slane %v1557, 4
  %v1601 = vtanh.pop %v1599
  %v1602 = vrot.slane %v1557, 6
  %v1604 = vxor.u32 %v1602, 2147483648
  %v1605 = vmul.f32 %v1604, 1.442695
  %v1606 = vpow.pop %v1605
  %v1607 = vadd.f32 %v1606, 1.0
  %v1608 = vrcp.pop %v1607
  %v1609 = vmul.f32 %v1607, %v1608
  %v1610 = vsub.f32 1.0, %v1609
  %v1611 = vmul.f32 %v1608, %v1610
  %v1612 = vadd.f32 %v1608, %v1611
  %vm1613 = vweird.f32 %v1607
  %vm1614 = vweird.f32 %v1608
  %vm1615 = vmor %vm1613, %vm1614
  %v1616 = vsel %vm1615, %v1608, %v1612
  %v1617 = vand.u32 2147483647, %v1607
  %vm1618 = vcmp.eq.f32.partialorder %v1617, 8.507059e+37
  %v1619 = vand.u32 %v1607, 2147483648
  %v1620 = vor.u32 1.1754944e-38, %v1619
  %v1621 = vsel %vm1618, %v1620, %v1616
  %v1622 = vmul.f32 1.0, %v1621
  %v1623 = vmul.f32 %v1598, %v1395
  %v1624 = vmul.f32 %v1576, %v1601
  %v1625 = vadd.f32 %v1623, %v1624
  %v1626 = vtanh.pop %v1625
  %v1627 = vmul.f32 %v1622, %v1626
  %s1628 = scalar_lea.vmem %s2, 12
  %1629 = vst [vmem:[%s1628] sm:$0x3] %v1627
  %s1630 = scalar_lea.vmem %s0, 56
  %v1631 = vld [vmem:[%s1630] sm:$0xff]
  %v1632 = vld [vmem:[%s1] sm:$0xff]
  %v1633 = vld [vmem:[%s1 + $0x8] sm:$0xff]
  %v1634 = vld [vmem:[%s1 + $0x10] sm:$0xff]
  %v1635 = vld [vmem:[%s1 + $0x18] sm:$0xff]
  %v1636 = vld [vmem:[%s1 + $0x20] sm:$0xff]
  %v1637 = vld [vmem:[%s1 + $0x28] sm:$0xff]
  %v1638 = vld [vmem:[%s1 + $0x30] sm:$0xff]
  %v1639 = vld [vmem:[%s1 + $0x38] sm:$0xff]
  %v1640 = vld [vmem:[%s1 + $0x40] sm:$0xff]
  %v1641 = vld [vmem:[%s1 + $0x48] sm:$0xff]
  %v1642 = vld [vmem:[%s1 + $0x50] sm:$0xff]
  %v1643 = vld [vmem:[%s1 + $0x58] sm:$0xff]
  %v1644 = vld [vmem:[%s1 + $0x60] sm:$0xff]
  %v1645 = vld [vmem:[%s1 + $0x68] sm:$0xff]
  %v1646 = vld [vmem:[%s1 + $0x70] sm:$0xff]
  %v1647 = vld [vmem:[%s1 + $0x78] sm:$0xff]
  %v1648 = vld [vmem:[%s1 + $0x80] sm:$0xff]
  %v1649 = vld [vmem:[%s1 + $0x88] sm:$0xff]
  %v1650 = vld [vmem:[%s1 + $0x90] sm:$0xff]
  %v1651 = vld [vmem:[%s1 + $0x98] sm:$0xff]
  %v1652 = vld [vmem:[%s1 + $0xa0] sm:$0xff]
  %v1653 = vld [vmem:[%s1 + $0xa8] sm:$0xff]
  %v1654 = vld [vmem:[%s1 + $0xb0] sm:$0xff]
  %v1655 = vld [vmem:[%s1 + $0xb8] sm:$0xff]
  %v1656 = vld [vmem:[%s1 + $0xc0] sm:$0xff]
  %v1657 = vld [vmem:[%s1 + $0xc8] sm:$0xff]
  %v1658 = vld [vmem:[%s1 + $0xd0] sm:$0xff]
  %v1659 = vld [vmem:[%s1 + $0xd8] sm:$0xff]
  %v1660 = vld [vmem:[%s1 + $0xe0] sm:$0xff]
  %v1661 = vld [vmem:[%s1 + $0xe8] sm:$0xff]
  %v1662 = vld [vmem:[%s1 + $0xf0] sm:$0xff]
  %v1663 = vld [vmem:[%s1 + $0xf8] sm:$0xff]
  %v1664 = vld [vmem:[%s1 + $0x100] sm:$0xff]
  %v1665 = vld [vmem:[%s1 + $0x108] sm:$0xff]
  %v1666 = vld [vmem:[%s1 + $0x110] sm:$0xff]
  %v1667 = vld [vmem:[%s1 + $0x118] sm:$0xff]
  %v1668 = vld [vmem:[%s1 + $0x120] sm:$0xff]
  %v1669 = vld [vmem:[%s1 + $0x128] sm:$0xff]
  %v1670 = vld [vmem:[%s1 + $0x130] sm:$0xff]
  %v1671 = vld [vmem:[%s1 + $0x138] sm:$0xff]
  %v1672 = vld [vmem:[%s1 + $0x140] sm:$0xff]
  %v1673 = vld [vmem:[%s1 + $0x148] sm:$0xff]
  %v1674 = vld [vmem:[%s1 + $0x150] sm:$0xff]
  %v1675 = vld [vmem:[%s1 + $0x158] sm:$0xff]
  %v1676 = vld [vmem:[%s1 + $0x160] sm:$0xff]
  %v1677 = vld [vmem:[%s1 + $0x168] sm:$0xff]
  %v1678 = vld [vmem:[%s1 + $0x170] sm:$0xff]
  %v1679 = vld [vmem:[%s1 + $0x178] sm:$0xff]
  %v1680 = vld [vmem:[%s1 + $0x180] sm:$0xff]
  %v1681 = vld [vmem:[%s1 + $0x188] sm:$0xff]
  %v1682 = vld [vmem:[%s1 + $0x190] sm:$0xff]
  %v1683 = vld [vmem:[%s1 + $0x198] sm:$0xff]
  %v1684 = vld [vmem:[%s1 + $0x1a0] sm:$0xff]
  %v1685 = vld [vmem:[%s1 + $0x1a8] sm:$0xff]
  %v1686 = vld [vmem:[%s1 + $0x1b0] sm:$0xff]
  %v1687 = vld [vmem:[%s1 + $0x1b8] sm:$0xff]
  %v1688 = vld [vmem:[%s1 + $0x1c0] sm:$0xff]
  %v1689 = vld [vmem:[%s1 + $0x1c8] sm:$0xff]
  %v1690 = vld [vmem:[%s1 + $0x1d0] sm:$0xff]
  %v1691 = vld [vmem:[%s1 + $0x1d8] sm:$0xff]
  %v1692 = vld [vmem:[%s1 + $0x1e0] sm:$0xff]
  %v1693 = vld [vmem:[%s1 + $0x1e8] sm:$0xff]
  %v1694 = vld [vmem:[%s1 + $0x1f0] sm:$0xff]
  %v1695 = vld [vmem:[%s1 + $0x1f8] sm:$0xff]
  %1696 = vmatpush.msra.mxu0 %v1692
  %1697 = vmatpush.msra.mxu0 %v1688
  %1698 = vmatpush.msra.mxu0 %v1684
  %1699 = vmatpush.msra.mxu0 %v1680
  %1700 = vmatpush.msra.mxu0 %v1676
  %1701 = vmatpush.msra.mxu0 %v1672
  %1702 = vmatpush.msra.mxu0 %v1668
  %1703 = vmatpush.msra.mxu0 %v1664
  %1704 = vmatpush.msra.mxu0 %v1660
  %1705 = vmatpush.msra.mxu0 %v1656
  %1706 = vmatpush.msra.mxu0 %v1652
  %1707 = vmatpush.msra.mxu0 %v1648
  %1708 = vmatpush.msra.mxu0 %v1644
  %1709 = vmatpush.msra.mxu0 %v1640
  %1710 = vmatpush.msra.mxu0 %v1636
  %1711 = vmatpush.msra.mxu0 %v1632
  %1712 = vmatmul.f32.gmra.mxu0 %v1627
  %v1713 = vpop.f32.mrf.mxu0
  %v1714 = vadd.f32 0.0, %v1713
  %1715 = vdwg.mxu0
  %1716 = vmatpush.msra.mxu0 %v1693
  %1717 = vmatpush.msra.mxu0 %v1689
  %1718 = vmatpush.msra.mxu0 %v1685
  %1719 = vmatpush.msra.mxu0 %v1681
  %1720 = vmatpush.msra.mxu0 %v1677
  %1721 = vmatpush.msra.mxu0 %v1673
  %1722 = vmatpush.msra.mxu0 %v1669
  %1723 = vmatpush.msra.mxu0 %v1665
  %1724 = vmatpush.msra.mxu0 %v1661
  %1725 = vmatpush.msra.mxu0 %v1657
  %1726 = vmatpush.msra.mxu0 %v1653
  %1727 = vmatpush.msra.mxu0 %v1649
  %1728 = vmatpush.msra.mxu0 %v1645
  %1729 = vmatpush.msra.mxu0 %v1641
  %1730 = vmatpush.msra.mxu0 %v1637
  %1731 = vmatpush.msra.mxu0 %v1633
  %1732 = vmatmul.f32.gmra.mxu0 %v1627
  %v1733 = vpop.f32.mrf.mxu0
  %v1734 = vadd.f32 0.0, %v1733
  %1735 = vdwg.mxu0
  %1736 = vmatpush.msra.mxu0 %v1694
  %1737 = vmatpush.msra.mxu0 %v1690
  %1738 = vmatpush.msra.mxu0 %v1686
  %1739 = vmatpush.msra.mxu0 %v1682
  %1740 = vmatpush.msra.mxu0 %v1678
  %1741 = vmatpush.msra.mxu0 %v1674
  %1742 = vmatpush.msra.mxu0 %v1670
  %1743 = vmatpush.msra.mxu0 %v1666
  %1744 = vmatpush.msra.mxu0 %v1662
  %1745 = vmatpush.msra.mxu0 %v1658
  %1746 = vmatpush.msra.mxu0 %v1654
  %1747 = vmatpush.msra.mxu0 %v1650
  %1748 = vmatpush.msra.mxu0 %v1646
  %1749 = vmatpush.msra.mxu0 %v1642
  %1750 = vmatpush.msra.mxu0 %v1638
  %1751 = vmatpush.msra.mxu0 %v1634
  %1752 = vmatmul.f32.gmra.mxu0 %v1627
  %v1753 = vpop.f32.mrf.mxu0
  %v1754 = vadd.f32 0.0, %v1753
  %1755 = vdwg.mxu0
  %1756 = vmatpush.msra.mxu0 %v1695
  %1757 = vmatpush.msra.mxu0 %v1691
  %1758 = vmatpush.msra.mxu0 %v1687
  %1759 = vmatpush.msra.mxu0 %v1683
  %1760 = vmatpush.msra.mxu0 %v1679
  %1761 = vmatpush.msra.mxu0 %v1675
  %1762 = vmatpush.msra.mxu0 %v1671
  %1763 = vmatpush.msra.mxu0 %v1667
  %1764 = vmatpush.msra.mxu0 %v1663
  %1765 = vmatpush.msra.mxu0 %v1659
  %1766 = vmatpush.msra.mxu0 %v1655
  %1767 = vmatpush.msra.mxu0 %v1651
  %1768 = vmatpush.msra.mxu0 %v1647
  %1769 = vmatpush.msra.mxu0 %v1643
  %1770 = vmatpush.msra.mxu0 %v1639
  %1771 = vmatpush.msra.mxu0 %v1635
  %1772 = vmatmul.f32.gmra.mxu0 %v1627
  %v1773 = vpop.f32.mrf.mxu0
  %v1774 = vadd.f32 0.0, %v1773
  %1775 = vdwg.mxu0
  %v1780 = vrot.slane %v1734, 6
  %v1781 = vrot.slane %v1754, 4
  %v1782 = vrot.slane %v1774, 2
  %v1783 = vsel %vm171, %v1714, %v1780
  %v1784 = vsel %vm173, %v1781, %v1782
  %v1785 = vsel %vm175, %v1783, %v1784
  %v1787 = vadd.f32 %v1631, %v1785
  %v1788 = vxor.u32 %v1787, 2147483648
  %v1789 = vmul.f32 %v1788, 1.442695
  %v1790 = vpow.pop %v1789
  %v1791 = vadd.f32 %v1790, 1.0
  %v1792 = vrcp.pop %v1791
  %v1793 = vmul.f32 %v1791, %v1792
  %v1794 = vsub.f32 1.0, %v1793
  %v1795 = vmul.f32 %v1792, %v1794
  %v1796 = vadd.f32 %v1792, %v1795
  %vm1797 = vweird.f32 %v1791
  %vm1798 = vweird.f32 %v1792
  %vm1799 = vmor %vm1797, %vm1798
  %v1800 = vsel %vm1799, %v1792, %v1796
  %v1801 = vand.u32 2147483647, %v1791
  %vm1802 = vcmp.eq.f32.partialorder %v1801, 8.507059e+37
  %v1803 = vand.u32 %v1791, 2147483648
  %v1804 = vor.u32 1.1754944e-38, %v1803
  %v1805 = vsel %vm1802, %v1804, %v1800
  %v1806 = vmul.f32 1.0, %v1805
  %v1808 = vrot.slane %v1787, 2
  %v1810 = vxor.u32 %v1808, 2147483648
  %v1811 = vmul.f32 %v1810, 1.442695
  %v1812 = vpow.pop %v1811
  %v1813 = vadd.f32 %v1812, 1.0
  %v1814 = vrcp.pop %v1813
  %v1815 = vmul.f32 %v1813, %v1814
  %v1816 = vsub.f32 1.0, %v1815
  %v1817 = vmul.f32 %v1814, %v1816
  %v1818 = vadd.f32 %v1814, %v1817
  %vm1819 = vweird.f32 %v1813
  %vm1820 = vweird.f32 %v1814
  %vm1821 = vmor %vm1819, %vm1820
  %v1822 = vsel %vm1821, %v1814, %v1818
  %v1823 = vand.u32 2147483647, %v1813
  %vm1824 = vcmp.eq.f32.partialorder %v1823, 8.507059e+37
  %v1825 = vand.u32 %v1813, 2147483648
  %v1826 = vor.u32 1.1754944e-38, %v1825
  %v1827 = vsel %vm1824, %v1826, %v1822
  %v1828 = vmul.f32 1.0, %v1827
  %v1829 = vrot.slane %v1787, 4
  %v1831 = vtanh.pop %v1829
  %v1832 = vrot.slane %v1787, 6
  %v1834 = vxor.u32 %v1832, 2147483648
  %v1835 = vmul.f32 %v1834, 1.442695
  %v1836 = vpow.pop %v1835
  %v1837 = vadd.f32 %v1836, 1.0
  %v1838 = vrcp.pop %v1837
  %v1839 = vmul.f32 %v1837, %v1838
  %v1840 = vsub.f32 1.0, %v1839
  %v1841 = vmul.f32 %v1838, %v1840
  %v1842 = vadd.f32 %v1838, %v1841
  %vm1843 = vweird.f32 %v1837
  %vm1844 = vweird.f32 %v1838
  %vm1845 = vmor %vm1843, %vm1844
  %v1846 = vsel %vm1845, %v1838, %v1842
  %v1847 = vand.u32 2147483647, %v1837
  %vm1848 = vcmp.eq.f32.partialorder %v1847, 8.507059e+37
  %v1849 = vand.u32 %v1837, 2147483648
  %v1850 = vor.u32 1.1754944e-38, %v1849
  %v1851 = vsel %vm1848, %v1850, %v1846
  %v1852 = vmul.f32 1.0, %v1851
  %v1853 = vmul.f32 %v1828, %v1625
  %v1854 = vmul.f32 %v1806, %v1831
  %v1855 = vadd.f32 %v1853, %v1854
  %v1856 = vtanh.pop %v1855
  %v1857 = vmul.f32 %v1852, %v1856
  %s1858 = scalar_lea.vmem %s2, 14
  %1859 = vst [vmem:[%s1858] sm:$0x3] %v1857
  %1860 = vst [vmem:[#allocation2] sm:$0x3] %v1857
  %1861 = vst [vmem:[#allocation3] sm:$0x3] %v1855
  // Predicated region
  $region14: #{lstm_sentiment_forward.1} parent=0 // pred_check
    _
  $region15: #{lstm_sentiment_forward.1} parent=0 // pred_check_branch
    %1863 = sbr.rel (0) target = $region17
  $region16: #{lstm_sentiment_forward.1} parent=0 // pred_region
    _
  $region17: #{lstm_sentiment_forward.1} parent=0 // pred_fallthru
    _
  // Predicated region
  $region18: #{lstm_sentiment_forward.1} parent=0 // pred_check
    _
  $region19: #{lstm_sentiment_forward.1} parent=0 // pred_check_branch
    %1865 = sbr.rel (0) target = $region21
  $region20: #{lstm_sentiment_forward.1} parent=0 // pred_region
    _
  $region21: #{lstm_sentiment_forward.1} parent=0 // pred_fallthru
    _

</llo_original>
